<compile_context>
chip_gen: v6e
topology: v6e:2x2x1
jax: 0.10.0
libtpu: 0.0.40
codegen_flags: <defaults>
</compile_context>

<pallas_src>
import functools

import jax
import jax.numpy as jnp
from jax.experimental import pallas as pl
from jax.experimental.pallas import tpu as pltpu


# ----------------------------------------------------------------------------- kernel
def _vit_decoder_kernel(x_ref,
                        ln1w_ref, ln1b_ref,
                        wqkv_ref, bqkv_ref,
                        wproj_ref, bproj_ref,
                        ln2w_ref, ln2b_ref,
                        fc1w_ref, fc1b_ref, fc2w_ref, fc2b_ref,
                        nfw_ref, nfb_ref, hw_ref, hb_ref,
                        out_ref, x_vmem, o_vmem, *, num_heads):
    l = pl.program_id(1)                      # depth axis (innermost, "arbitrary")
    Bt, N, D = x_vmem.shape
    hd = D // num_heads
    f32, bf16 = jnp.float32, jnp.bfloat16

    # depth step 0 of each batch tile: load the (pos-embed-added) input into the carried
    # f32 residual scratch.
    @pl.when(l == 0)
    def _():
        x_vmem[...] = x_ref[...].astype(f32)

    def layer_norm(x, w, b):
        mu = jnp.mean(x, axis=-1, keepdims=True)
        var = jnp.mean(jnp.square(x - mu), axis=-1, keepdims=True)
        return (x - mu) * jax.lax.rsqrt(var + 1e-5) * w + b    # torch LayerNorm eps=1e-5

    def matmul_bias(x2d, w_bf16, b_f32):
        # bf16 MXU inputs, f32 accumulation, f32 bias add.
        y = jnp.dot(x2d.astype(bf16), w_bf16, preferred_element_type=f32)
        return y + b_f32

    def erf(z):
        # Abramowitz & Stegun 7.1.26 rational approximation (|err| < 1.5e-7).
        # The divide goes to the EUP (exact reciprocal); exp is already EUP.
        a1, a2, a3, a4, a5 = 0.254829592, -0.284496736, 1.421413741, -1.453152027, 1.061405429
        pcoef = 0.3275911
        sgn = jnp.where(z >= 0.0, 1.0, -1.0)
        az = jnp.abs(z)
        t = pl.reciprocal(1.0 + pcoef * az, approx=False)
        poly = ((((a5 * t + a4) * t + a3) * t + a2) * t + a1) * t
        return sgn * (1.0 - poly * jnp.exp(-az * az))

    def gelu(z):
        return 0.5 * z * (1.0 + erf(z * 0.7071067811865476))

    x = x_vmem[...]                                            # (Bt, N, D) f32

    # ---------------- multi-head self-attention ----------------
    hln = layer_norm(x, ln1w_ref[...], ln1b_ref[...])
    h2 = hln.reshape(Bt * N, D).astype(bf16)
    # single fused lane-dense qkv projection (scale pre-folded into the q third)
    qkv = (jnp.dot(h2, wqkv_ref[...], preferred_element_type=f32)
           + bqkv_ref[...]).reshape(Bt, N, 3 * D)
    for hh in range(num_heads):                                # short static head loop
        q3 = qkv[:, :, 0 * D + hh * hd: 0 * D + (hh + 1) * hd].astype(bf16)
        k3 = qkv[:, :, 1 * D + hh * hd: 1 * D + (hh + 1) * hd].astype(bf16)
        v3 = qkv[:, :, 2 * D + hh * hd: 2 * D + (hh + 1) * hd].astype(bf16)
        s = jnp.einsum('bqd,bkd->bqk', q3, k3, preferred_element_type=f32)
        s = s - jnp.max(s, axis=-1, keepdims=True)
        p = jnp.exp(s)
        p = p / jnp.sum(p, axis=-1, keepdims=True)             # exact softmax (torch numerics)
        o = jnp.einsum('bqk,bkd->bqd', p.astype(bf16), v3, preferred_element_type=f32)
        # write this head's output into its lane slab; no carried accumulator, the
        # (N, N) score tensor and per-head values die here.
        o_vmem[:, :, hh * hd:(hh + 1) * hd] = o
    # ONE full-width output projection (contraction = D, not hd)
    attn = matmul_bias(o_vmem[...].reshape(Bt * N, D), wproj_ref[...], bproj_ref[...])
    x = x + attn.reshape(Bt, N, D)

    # ---------------- MLP ----------------
    hln = layer_norm(x, ln2w_ref[...], ln2b_ref[...])
    h1 = gelu(matmul_bias(hln.reshape(Bt * N, D), fc1w_ref[...], fc1b_ref[...]))
    x = x + matmul_bias(h1, fc2w_ref[...], fc2b_ref[...]).reshape(Bt, N, D)
    # TODO(synk): for very large D*mlp_ratio on v7x (64 MiB VMEM) stream fc1/fc2 in Dh tiles.

    x_vmem[...] = x

    # last depth step: final LayerNorm + head projection into the 128-padded slab
    @pl.when(l == pl.num_programs(1) - 1)
    def _():
        xf = layer_norm(x, nfw_ref[...], nfb_ref[...])
        y = matmul_bias(xf.reshape(Bt * N, D), hw_ref[...], hb_ref[...])
        out_ref[...] = y.reshape(Bt, N, -1).astype(out_ref.dtype)
    # TODO(synk): drop_rate / attn_drop_rate are 0.0 in this config -> dropout is identity.


# ----------------------------------------------------------------------------- glue
def get_sinusoid_encoding_table(n_position, d_hid):
    position = jnp.arange(n_position, dtype=jnp.float32)[:, None]
    i = jnp.arange(d_hid)
    div = jnp.power(10000.0, (2.0 * (i // 2)).astype(jnp.float32) / d_hid)
    angles = position / div[None, :]
    table = jnp.where(i[None, :] % 2 == 0, jnp.sin(angles), jnp.cos(angles))
    return table[None, :, :].astype(jnp.float32)               # (1, N, D)


def init_params(key, *, depth, d_model, mlp_ratio, num_classes):
    """torch-equivalent f32 parameters (xavier_uniform linears, unit LayerNorms)."""
    D, Dh, C = d_model, d_model * mlp_ratio, num_classes

    def xavier(k, fi, fo):
        lim = (6.0 / (fi + fo)) ** 0.5
        return jax.random.uniform(k, (fi, fo), jnp.float32, -lim, lim)

    ks = list(jax.random.split(key, depth * 4 + 1))
    qkv_w, proj_w, fc1_w, fc2_w = [], [], [], []
    for i in range(depth):
        qkv_w.append(xavier(ks[4 * i + 0], D, 3 * D))
        proj_w.append(xavier(ks[4 * i + 1], D, D))
        fc1_w.append(xavier(ks[4 * i + 2], D, Dh))
        fc2_w.append(xavier(ks[4 * i + 3], Dh, D))
    return dict(
        ln1_w=jnp.ones((depth, 1, D)), ln1_b=jnp.zeros((depth, 1, D)),
        qkv_w=jnp.stack(qkv_w), qkv_b=jnp.zeros((depth, 1, 3 * D)),
        proj_w=jnp.stack(proj_w), proj_b=jnp.zeros((depth, 1, D)),
        ln2_w=jnp.ones((depth, 1, D)), ln2_b=jnp.zeros((depth, 1, D)),
        fc1_w=jnp.stack(fc1_w), fc1_b=jnp.zeros((depth, 1, Dh)),
        fc2_w=jnp.stack(fc2_w), fc2_b=jnp.zeros((depth, 1, D)),
        norm_w=jnp.ones((1, D)), norm_b=jnp.zeros((1, D)),
        head_w=xavier(ks[-1], D, C), head_b=jnp.zeros((1, C)),
    )


def vit_decoder_forward(x, pos, params, *, num_heads, batch_tile=None):
    B, N, D = x.shape
    depth = params["ln1_w"].shape[0]
    Dh = params["fc1_w"].shape[-1]
    C = params["head_w"].shape[-1]
    H = num_heads
    hd = D // H
    assert D % H == 0
    C_pad = ((C + 127) // 128) * 128                 # lane-dense, 128-padded head output
    bf16, f32 = jnp.bfloat16, jnp.float32
    scale = float(hd) ** -0.5

    # positional embedding added once here (cheap XLA add) -> kernel holds no pos block.
    x = (x + pos).astype(f32)

    # -------- batch-tile selection --------
    if batch_tile is None:
        def act_bytes(bt):
            # carried residual + head-output scratch + qkv/hln/h1/out intermediates + scores
            return (bt * N * (4 * (D + D + 3 * D + D + Dh + C_pad) + 8 * N)
                    + 2 * bt * N * D * 4)            # double-buffered x input block
        batch_tile = 1
        for cand in range(1, B + 1):
            if B % cand:
                continue
            if B >= 2 and B // cand < 2:
                continue                             # keep >=2 tiles so both v7x TCs get work
            if act_bytes(cand) <= (24 << 20):
                batch_tile = cand
    Bt = batch_tile
    assert B % Bt == 0

    # -------- host-side weight packing (bf16 matmul weights, f32 biases/LN) --------
    qkv_w = params["qkv_w"]                          # (depth, D, 3D), (in, out)
    qkv_b = params["qkv_b"].reshape(depth, 1, 3 * D)
    q_scale = jnp.concatenate([jnp.full((D,), scale, f32), jnp.ones((2 * D,), f32)])
    w_qkv = (qkv_w * q_scale[None, None, :]).astype(bf16)      # scale folded into q third
    b_qkv = (qkv_b * q_scale[None, None, :]).astype(f32)
    w_proj = params["proj_w"].astype(bf16)                     # (depth, D, D)
    b_proj = params["proj_b"].astype(f32)                      # (depth, 1, D)
    ln1_w, ln1_b = params["ln1_w"].astype(f32), params["ln1_b"].astype(f32)
    ln2_w, ln2_b = params["ln2_w"].astype(f32), params["ln2_b"].astype(f32)
    fc1_w, fc1_b = params["fc1_w"].astype(bf16), params["fc1_b"].astype(f32)
    fc2_w, fc2_b = params["fc2_w"].astype(bf16), params["fc2_b"].astype(f32)
    norm_w, norm_b = params["norm_w"].astype(f32), params["norm_b"].astype(f32)
    head_w = jnp.zeros((D, C_pad), f32).at[:, :C].set(params["head_w"]).astype(bf16)
    head_b = jnp.zeros((1, C_pad), f32).at[:, :C].set(params["head_b"])

    # -------- BlockSpecs --------
    def per_layer(shape):                            # leading depth axis, squeezed
        nd = len(shape)
        return pl.BlockSpec((None,) + tuple(shape), lambda b, l, nd=nd: (l,) + (0,) * nd)

    def shared(shape):                               # grid-invariant
        nd = len(shape)
        return pl.BlockSpec(tuple(shape), lambda b, l, nd=nd: (0,) * nd)

    # TODO(synk): on v7x, sweep pipeline_mode=pl.Buffered(1) on x_spec and the shared()
    #             inputs (block index constant along depth), and pl.Buffered(3) on the
    #             fc1/fc2 per-layer specs on v5e/v6e if weight DMA is exposed.
    x_spec = pl.BlockSpec((Bt, N, D), lambda b, l: (b, 0, 0))
    out_spec = pl.BlockSpec((Bt, N, C_pad), lambda b, l: (b, 0, 0))

    in_specs = [
        x_spec,                                      # x (pos-embed already added)
        per_layer((1, D)), per_layer((1, D)),        # ln1 w, b
        per_layer((D, 3 * D)), per_layer((1, 3 * D)),    # fused qkv w, b
        per_layer((D, D)), per_layer((1, D)),        # proj w, b
        per_layer((1, D)), per_layer((1, D)),        # ln2 w, b
        per_layer((D, Dh)), per_layer((1, Dh)),      # fc1 w, b
        per_layer((Dh, D)), per_layer((1, D)),       # fc2 w, b
        shared((1, D)), shared((1, D)),              # final norm w, b
        shared((D, C_pad)), shared((1, C_pad)),      # head w, b (lane-dense padded)
    ]

    # -------- explicit VMEM budget --------
    def _nb(a):
        return int(a.size) * int(jnp.dtype(a.dtype).itemsize)

    layer_arrays = [ln1_w, ln1_b, w_qkv, b_qkv, w_proj, b_proj,
                    ln2_w, ln2_b, fc1_w, fc1_b, fc2_w, fc2_b]
    per_layer_bytes = sum(_nb(a) for a in layer_arrays) // depth
    invariant_bytes = (Bt * N * D * 4 + _nb(norm_w) + _nb(norm_b)
                       + _nb(head_w) + _nb(head_b) + Bt * N * C_pad * 4)
    scratch_bytes = 2 * Bt * N * D * 4               # residual + head-output scratch
    interm_bytes = Bt * N * (3 * D + 2 * D + Dh) * 4 + 2 * Bt * N * N * 4
    vmem_limit = 2 * (per_layer_bytes + invariant_bytes) + scratch_bytes + interm_bytes + (6 << 20)
    vmem_limit = max(vmem_limit, 32 << 20)           # at least the v6e default scoped limit
    vmem_limit = min(vmem_limit, 48 << 20)           # headroom below v7x's 64 MiB/TC

    # -------- cost estimate (scheduling hint only) --------
    flops = (depth * B * N * (2 * D * 3 * D + 2 * D * D + 4 * D * Dh + 4 * N * D)
             + 2 * B * N * D * C_pad)
    transcendentals = depth * B * (H * N * N + N * Dh)
    bytes_accessed = (sum(_nb(a) for a in layer_arrays) * (B // Bt)
                      + (_nb(norm_w) + _nb(norm_b) + _nb(head_w) + _nb(head_b)) * (B // Bt)
                      + _nb(x) + B * N * C_pad * 4)
    cost = pl.CostEstimate(flops=int(flops), transcendentals=int(transcendentals),
                           bytes_accessed=int(bytes_accessed))

    grid_spec = pltpu.PrefetchScalarGridSpec(
        num_scalar_prefetch=0,
        grid=(B // Bt, depth),
        in_specs=in_specs,
        out_specs=out_spec,
        scratch_shapes=[pltpu.VMEM((Bt, N, D), jnp.float32),   # carried residual
                        pltpu.VMEM((Bt, N, D), jnp.float32)],  # per-layer head outputs
    )

    kernel = functools.partial(_vit_decoder_kernel, num_heads=num_heads)
    out_padded = pl.pallas_call(
        kernel,
        out_shape=jax.ShapeDtypeStruct((B, N, C_pad), jnp.float32),
        grid_spec=grid_spec,
        compiler_params=pltpu.CompilerParams(
            dimension_semantics=("parallel", "arbitrary"),
            vmem_limit_bytes=int(vmem_limit)),
        cost_estimate=cost,
    )(x,
      ln1_w, ln1_b,
      w_qkv, b_qkv,
      w_proj, b_proj,
      ln2_w, ln2_b,
      fc1_w, fc1_b, fc2_w, fc2_b,
      norm_w, norm_b, head_w, head_b)
    return out_padded[:, :, :C]


# ----------------------------------------------------------------------------- main
if __name__ == "__main__":
    # small config consistent with the module's constructor constraint:
    # num_classes == out_chans * patch_size**2
    patch_size, out_chans = 4, 2
    num_classes = out_chans * patch_size ** 2        # 32
    num_patches = 8
    d_model = 32
    depth = 2
    num_heads = 4
    mlp_ratio = 4
    B = 2

    root = jax.random.PRNGKey(0)
    k_x, k_p = jax.random.split(root)
    x = jax.random.normal(k_x, (B, num_patches, d_model), dtype=jnp.float32)
    params = init_params(k_p, depth=depth, d_model=d_model,
                         mlp_ratio=mlp_ratio, num_classes=num_classes)
    pos = get_sinusoid_encoding_table(num_patches, d_model)

    out = vit_decoder_forward(x, pos, params, num_heads=num_heads)
    out = jax.block_until_ready(out)
    assert out.shape == (B, num_patches, num_classes)
    print("KERNEL_OK")
</pallas_src>

<mosaic_0001>
module attributes {stable_mosaic.version = 11 : i64} {
  func.func @_vit_decoder_kernel(%arg0: i32, %arg1: i32, %arg2: memref<1x8x32xf32, #tpu.memory_space<vmem>>, %arg3: memref<1x1x32xf32, #tpu.memory_space<vmem>>, %arg4: memref<1x1x32xf32, #tpu.memory_space<vmem>>, %arg5: memref<1x32x96xbf16, #tpu.memory_space<vmem>>, %arg6: memref<1x1x96xf32, #tpu.memory_space<vmem>>, %arg7: memref<1x32x32xbf16, #tpu.memory_space<vmem>>, %arg8: memref<1x1x32xf32, #tpu.memory_space<vmem>>, %arg9: memref<1x1x32xf32, #tpu.memory_space<vmem>>, %arg10: memref<1x1x32xf32, #tpu.memory_space<vmem>>, %arg11: memref<1x32x128xbf16, #tpu.memory_space<vmem>>, %arg12: memref<1x1x128xf32, #tpu.memory_space<vmem>>, %arg13: memref<1x128x32xbf16, #tpu.memory_space<vmem>>, %arg14: memref<1x1x32xf32, #tpu.memory_space<vmem>>, %arg15: memref<1x32xf32, #tpu.memory_space<vmem>>, %arg16: memref<1x32xf32, #tpu.memory_space<vmem>>, %arg17: memref<32x128xbf16, #tpu.memory_space<vmem>>, %arg18: memref<1x128xf32, #tpu.memory_space<vmem>>, %arg19: memref<1x8x128xf32, #tpu.memory_space<vmem>>, %arg20: memref<1x8x32xf32, #tpu.memory_space<vmem>>, %arg21: memref<1x8x32xf32, #tpu.memory_space<vmem>>) attributes {dimension_semantics = [#tpu.dimension_semantics<parallel>, #tpu.dimension_semantics<arbitrary>], iteration_bounds = array<i64: 2, 2>, scalar_prefetch = 0 : i64, scratch_operands = 2 : i64, tpu.core_type = #tpu.core_type<tc>, window_params = [{transform_indices = @transform_0, window_bounds = array<i64: 1, 8, 32>}, {transform_indices = @transform_1, window_bounds = array<i64: 1, 1, 32>}, {transform_indices = @transform_2, window_bounds = array<i64: 1, 1, 32>}, {transform_indices = @transform_3, window_bounds = array<i64: 1, 32, 96>}, {transform_indices = @transform_4, window_bounds = array<i64: 1, 1, 96>}, {transform_indices = @transform_5, window_bounds = array<i64: 1, 32, 32>}, {transform_indices = @transform_6, window_bounds = array<i64: 1, 1, 32>}, {transform_indices = @transform_7, window_bounds = array<i64: 1, 1, 32>}, {transform_indices = @transform_8, window_bounds = array<i64: 1, 1, 32>}, {transform_indices = @transform_9, window_bounds = array<i64: 1, 32, 128>}, {transform_indices = @transform_10, window_bounds = array<i64: 1, 1, 128>}, {transform_indices = @transform_11, window_bounds = array<i64: 1, 128, 32>}, {transform_indices = @transform_12, window_bounds = array<i64: 1, 1, 32>}, {pipeline_mode = #tpu.pipeline_mode<synchronous>, transform_indices = @transform_13, window_bounds = array<i64: 1, 32>}, {pipeline_mode = #tpu.pipeline_mode<synchronous>, transform_indices = @transform_14, window_bounds = array<i64: 1, 32>}, {pipeline_mode = #tpu.pipeline_mode<synchronous>, transform_indices = @transform_15, window_bounds = array<i64: 32, 128>}, {pipeline_mode = #tpu.pipeline_mode<synchronous>, transform_indices = @transform_16, window_bounds = array<i64: 1, 128>}, {transform_indices = @transform_17, window_bounds = array<i64: 1, 8, 128>}]} {
    %c0_i32 = arith.constant 0 : i32
    %0 = arith.cmpi eq, %arg1, %c0_i32 : i32
    %1 = arith.extui %0 : i1 to i32
    %c0_i32_0 = arith.constant 0 : i32
    %2 = arith.cmpi ne, %1, %c0_i32_0 : i32
    scf.if %2 {
      %c0_99 = arith.constant 0 : index
      %c0_100 = arith.constant 0 : index
      %c0_101 = arith.constant 0 : index
      %221 = vector.load %arg2[%c0_99, %c0_100, %c0_101] : memref<1x8x32xf32, #tpu.memory_space<vmem>>, vector<1x8x32xf32>
      %c0_102 = arith.constant 0 : index
      %c0_103 = arith.constant 0 : index
      %c0_104 = arith.constant 0 : index
      %222 = vector.load %arg20[%c0_102, %c0_103, %c0_104] : memref<1x8x32xf32, #tpu.memory_space<vmem>>, vector<1x8x32xf32>
      tpu.vector_store %arg20[%c0_102, %c0_103, %c0_104], %221 {strides = array<i32>} : memref<1x8x32xf32, #tpu.memory_space<vmem>>, vector<1x8x32xf32>,
    } else {
    }
    %c0 = arith.constant 0 : index
    %c0_1 = arith.constant 0 : index
    %c0_2 = arith.constant 0 : index
    %3 = vector.load %arg20[%c0, %c0_1, %c0_2] : memref<1x8x32xf32, #tpu.memory_space<vmem>>, vector<1x8x32xf32>
    %c0_3 = arith.constant 0 : index
    %c0_4 = arith.constant 0 : index
    %c0_5 = arith.constant 0 : index
    %4 = vector.load %arg3[%c0_3, %c0_4, %c0_5] : memref<1x1x32xf32, #tpu.memory_space<vmem>>, vector<1x1x32xf32>
    %5 = vector.shape_cast %4 : vector<1x1x32xf32> to vector<1x32xf32>
    %c0_6 = arith.constant 0 : index
    %c0_7 = arith.constant 0 : index
    %c0_8 = arith.constant 0 : index
    %6 = vector.load %arg4[%c0_6, %c0_7, %c0_8] : memref<1x1x32xf32, #tpu.memory_space<vmem>>, vector<1x1x32xf32>
    %7 = vector.shape_cast %6 : vector<1x1x32xf32> to vector<1x32xf32>
    %cst = arith.constant dense<0.000000e+00> : vector<1x8xf32>
    %8 = vector.multi_reduction <add>, %3, %cst [2] : vector<1x8x32xf32> to vector<1x8xf32>
    %9 = vector.shape_cast %8 : vector<1x8xf32> to vector<1x8x1xf32>
    %cst_9 = arith.constant 3.200000e+01 : f32
    %10 = vector.broadcast %cst_9 : f32 to vector<1x8x1xf32>
    %11 = arith.divf %9, %10 : vector<1x8x1xf32>
    %12 = vector.broadcast %11 : vector<1x8x1xf32> to vector<1x8x32xf32>
    %13 = arith.subf %3, %12 : vector<1x8x32xf32>
    %14 = arith.mulf %13, %13 : vector<1x8x32xf32>
    %cst_10 = arith.constant dense<0.000000e+00> : vector<1x8xf32>
    %15 = vector.multi_reduction <add>, %14, %cst_10 [2] : vector<1x8x32xf32> to vector<1x8xf32>
    %16 = vector.shape_cast %15 : vector<1x8xf32> to vector<1x8x1xf32>
    %cst_11 = arith.constant 3.200000e+01 : f32
    %17 = vector.broadcast %cst_11 : f32 to vector<1x8x1xf32>
    %18 = arith.divf %16, %17 : vector<1x8x1xf32>
    %19 = vector.broadcast %11 : vector<1x8x1xf32> to vector<1x8x32xf32>
    %20 = arith.subf %3, %19 : vector<1x8x32xf32>
    %cst_12 = arith.constant 9.99999974E-6 : f32
    %21 = vector.broadcast %cst_12 : f32 to vector<1x8x1xf32>
    %22 = arith.addf %18, %21 : vector<1x8x1xf32>
    %23 = math.rsqrt %22 : vector<1x8x1xf32>
    %24 = vector.broadcast %23 : vector<1x8x1xf32> to vector<1x8x32xf32>
    %25 = arith.mulf %20, %24 : vector<1x8x32xf32>
    %26 = vector.shape_cast %5 : vector<1x32xf32> to vector<1x1x32xf32>
    %27 = vector.broadcast %26 : vector<1x1x32xf32> to vector<1x8x32xf32>
    %28 = arith.mulf %25, %27 : vector<1x8x32xf32>
    %29 = vector.shape_cast %7 : vector<1x32xf32> to vector<1x1x32xf32>
    %30 = vector.broadcast %29 : vector<1x1x32xf32> to vector<1x8x32xf32>
    %31 = arith.addf %28, %30 : vector<1x8x32xf32>
    %32 = vector.shape_cast %31 : vector<1x8x32xf32> to vector<8x32xf32>
    %33 = arith.truncf %32 : vector<8x32xf32> to vector<8x32xbf16>
    %c0_13 = arith.constant 0 : index
    %c0_14 = arith.constant 0 : index
    %c0_15 = arith.constant 0 : index
    %34 = vector.load %arg5[%c0_13, %c0_14, %c0_15] : memref<1x32x96xbf16, #tpu.memory_space<vmem>>, vector<1x32x96xbf16>
    %35 = vector.shape_cast %34 : vector<1x32x96xbf16> to vector<32x96xbf16>
    %cst_16 = arith.constant dense<0.000000e+00> : vector<8x96xf32>
    %36 = tpu.matmul %33, %35, %cst_16 {dimension_numbers = #tpu.dot_dimension_numbers<[1], [0], [0], [1], [0, 0, 1, 1], [], []>} : vector<8x32xbf16>, vector<32x96xbf16>, vector<8x96xf32> -> vector<8x96xf32>
    %c0_17 = arith.constant 0 : index
    %c0_18 = arith.constant 0 : index
    %c0_19 = arith.constant 0 : index
    %37 = vector.load %arg6[%c0_17, %c0_18, %c0_19] : memref<1x1x96xf32, #tpu.memory_space<vmem>>, vector<1x1x96xf32>
    %38 = vector.shape_cast %37 : vector<1x1x96xf32> to vector<1x96xf32>
    %39 = vector.broadcast %38 : vector<1x96xf32> to vector<8x96xf32>
    %40 = arith.addf %36, %39 : vector<8x96xf32>
    %41 = vector.shape_cast %40 : vector<8x96xf32> to vector<1x8x96xf32>
    %42 = vector.extract_strided_slice %41 {offsets = [0, 0, 0], sizes = [1, 8, 8], strides = [1, 1, 1]} : vector<1x8x96xf32> to vector<1x8x8xf32>
    %43 = arith.truncf %42 : vector<1x8x8xf32> to vector<1x8x8xbf16>
    %44 = vector.extract_strided_slice %41 {offsets = [0, 0, 32], sizes = [1, 8, 8], strides = [1, 1, 1]} : vector<1x8x96xf32> to vector<1x8x8xf32>
    %45 = arith.truncf %44 : vector<1x8x8xf32> to vector<1x8x8xbf16>
    %46 = vector.extract_strided_slice %41 {offsets = [0, 0, 64], sizes = [1, 8, 8], strides = [1, 1, 1]} : vector<1x8x96xf32> to vector<1x8x8xf32>
    %47 = arith.truncf %46 : vector<1x8x8xf32> to vector<1x8x8xbf16>
    "tpu.trace_start"() <{level = 10 : i32, message = "bqd,bkd->bqk"}> : () -> ()
    %cst_20 = arith.constant dense<0.000000e+00> : vector<1x8x8xf32>
    %48 = tpu.matmul %43, %45, %cst_20 {dimension_numbers = #tpu.dot_dimension_numbers<[2], [2], [1], [1], [0, 0, 0, 1, 1, 1], [0], [0]>} : vector<1x8x8xbf16>, vector<1x8x8xbf16>, vector<1x8x8xf32> -> vector<1x8x8xf32>
    "tpu.trace_stop"() : () -> ()
    %cst_21 = arith.constant dense<0xFF800000> : vector<1x8xf32>
    %49 = vector.multi_reduction <maximumf>, %48, %cst_21 [2] : vector<1x8x8xf32> to vector<1x8xf32>
    %50 = vector.shape_cast %49 : vector<1x8xf32> to vector<1x8x1xf32>
    %51 = vector.broadcast %50 : vector<1x8x1xf32> to vector<1x8x8xf32>
    %52 = arith.subf %48, %51 : vector<1x8x8xf32>
    %53 = math.exp %52 : vector<1x8x8xf32>
    %cst_22 = arith.constant dense<0.000000e+00> : vector<1x8xf32>
    %54 = vector.multi_reduction <add>, %53, %cst_22 [2] : vector<1x8x8xf32> to vector<1x8xf32>
    %55 = vector.shape_cast %54 : vector<1x8xf32> to vector<1x8x1xf32>
    %56 = vector.broadcast %55 : vector<1x8x1xf32> to vector<1x8x8xf32>
    %57 = arith.divf %53, %56 : vector<1x8x8xf32>
    %58 = arith.truncf %57 : vector<1x8x8xf32> to vector<1x8x8xbf16>
    "tpu.trace_start"() <{level = 10 : i32, message = "bqk,bkd->bqd"}> : () -> ()
    %cst_23 = arith.constant dense<0.000000e+00> : vector<1x8x8xf32>
    %59 = tpu.matmul %58, %47, %cst_23 {dimension_numbers = #tpu.dot_dimension_numbers<[2], [1], [1], [2], [0, 0, 0, 1, 1, 2], [0], [0]>} : vector<1x8x8xbf16>, vector<1x8x8xbf16>, vector<1x8x8xf32> -> vector<1x8x8xf32>
    "tpu.trace_stop"() : () -> ()
    %c0_24 = arith.constant 0 : index
    %c0_25 = arith.constant 0 : index
    %c0_26 = arith.constant 0 : index
    %60 = vector.load %arg21[%c0_24, %c0_25, %c0_26] : memref<1x8x32xf32, #tpu.memory_space<vmem>>, vector<1x8x8xf32>
    tpu.vector_store %arg21[%c0_24, %c0_25, %c0_26], %59 {strides = array<i32>} : memref<1x8x32xf32, #tpu.memory_space<vmem>>, vector<1x8x8xf32>,
    %61 = vector.extract_strided_slice %41 {offsets = [0, 0, 8], sizes = [1, 8, 8], strides = [1, 1, 1]} : vector<1x8x96xf32> to vector<1x8x8xf32>
    %62 = arith.truncf %61 : vector<1x8x8xf32> to vector<1x8x8xbf16>
    %63 = vector.extract_strided_slice %41 {offsets = [0, 0, 40], sizes = [1, 8, 8], strides = [1, 1, 1]} : vector<1x8x96xf32> to vector<1x8x8xf32>
    %64 = arith.truncf %63 : vector<1x8x8xf32> to vector<1x8x8xbf16>
    %65 = vector.extract_strided_slice %41 {offsets = [0, 0, 72], sizes = [1, 8, 8], strides = [1, 1, 1]} : vector<1x8x96xf32> to vector<1x8x8xf32>
    %66 = arith.truncf %65 : vector<1x8x8xf32> to vector<1x8x8xbf16>
    "tpu.trace_start"() <{level = 10 : i32, message = "bqd,bkd->bqk"}> : () -> ()
    %cst_27 = arith.constant dense<0.000000e+00> : vector<1x8x8xf32>
    %67 = tpu.matmul %62, %64, %cst_27 {dimension_numbers = #tpu.dot_dimension_numbers<[2], [2], [1], [1], [0, 0, 0, 1, 1, 1], [0], [0]>} : vector<1x8x8xbf16>, vector<1x8x8xbf16>, vector<1x8x8xf32> -> vector<1x8x8xf32>
    "tpu.trace_stop"() : () -> ()
    %cst_28 = arith.constant dense<0xFF800000> : vector<1x8xf32>
    %68 = vector.multi_reduction <maximumf>, %67, %cst_28 [2] : vector<1x8x8xf32> to vector<1x8xf32>
    %69 = vector.shape_cast %68 : vector<1x8xf32> to vector<1x8x1xf32>
    %70 = vector.broadcast %69 : vector<1x8x1xf32> to vector<1x8x8xf32>
    %71 = arith.subf %67, %70 : vector<1x8x8xf32>
    %72 = math.exp %71 : vector<1x8x8xf32>
    %cst_29 = arith.constant dense<0.000000e+00> : vector<1x8xf32>
    %73 = vector.multi_reduction <add>, %72, %cst_29 [2] : vector<1x8x8xf32> to vector<1x8xf32>
    %74 = vector.shape_cast %73 : vector<1x8xf32> to vector<1x8x1xf32>
    %75 = vector.broadcast %74 : vector<1x8x1xf32> to vector<1x8x8xf32>
    %76 = arith.divf %72, %75 : vector<1x8x8xf32>
    %77 = arith.truncf %76 : vector<1x8x8xf32> to vector<1x8x8xbf16>
    "tpu.trace_start"() <{level = 10 : i32, message = "bqk,bkd->bqd"}> : () -> ()
    %cst_30 = arith.constant dense<0.000000e+00> : vector<1x8x8xf32>
    %78 = tpu.matmul %77, %66, %cst_30 {dimension_numbers = #tpu.dot_dimension_numbers<[2], [1], [1], [2], [0, 0, 0, 1, 1, 2], [0], [0]>} : vector<1x8x8xbf16>, vector<1x8x8xbf16>, vector<1x8x8xf32> -> vector<1x8x8xf32>
    "tpu.trace_stop"() : () -> ()
    %c0_31 = arith.constant 0 : index
    %c0_32 = arith.constant 0 : index
    %c8 = arith.constant 8 : index
    %79 = vector.load %arg21[%c0_31, %c0_32, %c8] : memref<1x8x32xf32, #tpu.memory_space<vmem>>, vector<1x8x8xf32>
    tpu.vector_store %arg21[%c0_31, %c0_32, %c8], %78 {strides = array<i32>} : memref<1x8x32xf32, #tpu.memory_space<vmem>>, vector<1x8x8xf32>,
    %80 = vector.extract_strided_slice %41 {offsets = [0, 0, 16], sizes = [1, 8, 8], strides = [1, 1, 1]} : vector<1x8x96xf32> to vector<1x8x8xf32>
    %81 = arith.truncf %80 : vector<1x8x8xf32> to vector<1x8x8xbf16>
    %82 = vector.extract_strided_slice %41 {offsets = [0, 0, 48], sizes = [1, 8, 8], strides = [1, 1, 1]} : vector<1x8x96xf32> to vector<1x8x8xf32>
    %83 = arith.truncf %82 : vector<1x8x8xf32> to vector<1x8x8xbf16>
    %84 = vector.extract_strided_slice %41 {offsets = [0, 0, 80], sizes = [1, 8, 8], strides = [1, 1, 1]} : vector<1x8x96xf32> to vector<1x8x8xf32>
    %85 = arith.truncf %84 : vector<1x8x8xf32> to vector<1x8x8xbf16>
    "tpu.trace_start"() <{level = 10 : i32, message = "bqd,bkd->bqk"}> : () -> ()
    %cst_33 = arith.constant dense<0.000000e+00> : vector<1x8x8xf32>
    %86 = tpu.matmul %81, %83, %cst_33 {dimension_numbers = #tpu.dot_dimension_numbers<[2], [2], [1], [1], [0, 0, 0, 1, 1, 1], [0], [0]>} : vector<1x8x8xbf16>, vector<1x8x8xbf16>, vector<1x8x8xf32> -> vector<1x8x8xf32>
    "tpu.trace_stop"() : () -> ()
    %cst_34 = arith.constant dense<0xFF800000> : vector<1x8xf32>
    %87 = vector.multi_reduction <maximumf>, %86, %cst_34 [2] : vector<1x8x8xf32> to vector<1x8xf32>
    %88 = vector.shape_cast %87 : vector<1x8xf32> to vector<1x8x1xf32>
    %89 = vector.broadcast %88 : vector<1x8x1xf32> to vector<1x8x8xf32>
    %90 = arith.subf %86, %89 : vector<1x8x8xf32>
    %91 = math.exp %90 : vector<1x8x8xf32>
    %cst_35 = arith.constant dense<0.000000e+00> : vector<1x8xf32>
    %92 = vector.multi_reduction <add>, %91, %cst_35 [2] : vector<1x8x8xf32> to vector<1x8xf32>
    %93 = vector.shape_cast %92 : vector<1x8xf32> to vector<1x8x1xf32>
    %94 = vector.broadcast %93 : vector<1x8x1xf32> to vector<1x8x8xf32>
    %95 = arith.divf %91, %94 : vector<1x8x8xf32>
    %96 = arith.truncf %95 : vector<1x8x8xf32> to vector<1x8x8xbf16>
    "tpu.trace_start"() <{level = 10 : i32, message = "bqk,bkd->bqd"}> : () -> ()
    %cst_36 = arith.constant dense<0.000000e+00> : vector<1x8x8xf32>
    %97 = tpu.matmul %96, %85, %cst_36 {dimension_numbers = #tpu.dot_dimension_numbers<[2], [1], [1], [2], [0, 0, 0, 1, 1, 2], [0], [0]>} : vector<1x8x8xbf16>, vector<1x8x8xbf16>, vector<1x8x8xf32> -> vector<1x8x8xf32>
    "tpu.trace_stop"() : () -> ()
    %c0_37 = arith.constant 0 : index
    %c0_38 = arith.constant 0 : index
    %c16 = arith.constant 16 : index
    %98 = vector.load %arg21[%c0_37, %c0_38, %c16] : memref<1x8x32xf32, #tpu.memory_space<vmem>>, vector<1x8x8xf32>
    tpu.vector_store %arg21[%c0_37, %c0_38, %c16], %97 {strides = array<i32>} : memref<1x8x32xf32, #tpu.memory_space<vmem>>, vector<1x8x8xf32>,
    %99 = vector.extract_strided_slice %41 {offsets = [0, 0, 24], sizes = [1, 8, 8], strides = [1, 1, 1]} : vector<1x8x96xf32> to vector<1x8x8xf32>
    %100 = arith.truncf %99 : vector<1x8x8xf32> to vector<1x8x8xbf16>
    %101 = vector.extract_strided_slice %41 {offsets = [0, 0, 56], sizes = [1, 8, 8], strides = [1, 1, 1]} : vector<1x8x96xf32> to vector<1x8x8xf32>
    %102 = arith.truncf %101 : vector<1x8x8xf32> to vector<1x8x8xbf16>
    %103 = vector.extract_strided_slice %41 {offsets = [0, 0, 88], sizes = [1, 8, 8], strides = [1, 1, 1]} : vector<1x8x96xf32> to vector<1x8x8xf32>
    %104 = arith.truncf %103 : vector<1x8x8xf32> to vector<1x8x8xbf16>
    "tpu.trace_start"() <{level = 10 : i32, message = "bqd,bkd->bqk"}> : () -> ()
    %cst_39 = arith.constant dense<0.000000e+00> : vector<1x8x8xf32>
    %105 = tpu.matmul %100, %102, %cst_39 {dimension_numbers = #tpu.dot_dimension_numbers<[2], [2], [1], [1], [0, 0, 0, 1, 1, 1], [0], [0]>} : vector<1x8x8xbf16>, vector<1x8x8xbf16>, vector<1x8x8xf32> -> vector<1x8x8xf32>
    "tpu.trace_stop"() : () -> ()
    %cst_40 = arith.constant dense<0xFF800000> : vector<1x8xf32>
    %106 = vector.multi_reduction <maximumf>, %105, %cst_40 [2] : vector<1x8x8xf32> to vector<1x8xf32>
    %107 = vector.shape_cast %106 : vector<1x8xf32> to vector<1x8x1xf32>
    %108 = vector.broadcast %107 : vector<1x8x1xf32> to vector<1x8x8xf32>
    %109 = arith.subf %105, %108 : vector<1x8x8xf32>
    %110 = math.exp %109 : vector<1x8x8xf32>
    %cst_41 = arith.constant dense<0.000000e+00> : vector<1x8xf32>
    %111 = vector.multi_reduction <add>, %110, %cst_41 [2] : vector<1x8x8xf32> to vector<1x8xf32>
    %112 = vector.shape_cast %111 : vector<1x8xf32> to vector<1x8x1xf32>
    %113 = vector.broadcast %112 : vector<1x8x1xf32> to vector<1x8x8xf32>
    %114 = arith.divf %110, %113 : vector<1x8x8xf32>
    %115 = arith.truncf %114 : vector<1x8x8xf32> to vector<1x8x8xbf16>
    "tpu.trace_start"() <{level = 10 : i32, message = "bqk,bkd->bqd"}> : () -> ()
    %cst_42 = arith.constant dense<0.000000e+00> : vector<1x8x8xf32>
    %116 = tpu.matmul %115, %104, %cst_42 {dimension_numbers = #tpu.dot_dimension_numbers<[2], [1], [1], [2], [0, 0, 0, 1, 1, 2], [0], [0]>} : vector<1x8x8xbf16>, vector<1x8x8xbf16>, vector<1x8x8xf32> -> vector<1x8x8xf32>
    "tpu.trace_stop"() : () -> ()
    %c0_43 = arith.constant 0 : index
    %c0_44 = arith.constant 0 : index
    %c24 = arith.constant 24 : index
    %117 = vector.load %arg21[%c0_43, %c0_44, %c24] : memref<1x8x32xf32, #tpu.memory_space<vmem>>, vector<1x8x8xf32>
    tpu.vector_store %arg21[%c0_43, %c0_44, %c24], %116 {strides = array<i32>} : memref<1x8x32xf32, #tpu.memory_space<vmem>>, vector<1x8x8xf32>,
    %c0_45 = arith.constant 0 : index
    %c0_46 = arith.constant 0 : index
    %c0_47 = arith.constant 0 : index
    %118 = vector.load %arg21[%c0_45, %c0_46, %c0_47] : memref<1x8x32xf32, #tpu.memory_space<vmem>>, vector<1x8x32xf32>
    %119 = vector.shape_cast %118 : vector<1x8x32xf32> to vector<8x32xf32>
    %c0_48 = arith.constant 0 : index
    %c0_49 = arith.constant 0 : index
    %c0_50 = arith.constant 0 : index
    %120 = vector.load %arg7[%c0_48, %c0_49, %c0_50] : memref<1x32x32xbf16, #tpu.memory_space<vmem>>, vector<1x32x32xbf16>
    %121 = vector.shape_cast %120 : vector<1x32x32xbf16> to vector<32x32xbf16>
    %c0_51 = arith.constant 0 : index
    %c0_52 = arith.constant 0 : index
    %c0_53 = arith.constant 0 : index
    %122 = vector.load %arg8[%c0_51, %c0_52, %c0_53] : memref<1x1x32xf32, #tpu.memory_space<vmem>>, vector<1x1x32xf32>
    %123 = vector.shape_cast %122 : vector<1x1x32xf32> to vector<1x32xf32>
    %124 = arith.truncf %119 : vector<8x32xf32> to vector<8x32xbf16>
    %cst_54 = arith.constant dense<0.000000e+00> : vector<8x32xf32>
    %125 = tpu.matmul %124, %121, %cst_54 {dimension_numbers = #tpu.dot_dimension_numbers<[1], [0], [0], [1], [0, 0, 1, 1], [], []>} : vector<8x32xbf16>, vector<32x32xbf16>, vector<8x32xf32> -> vector<8x32xf32>
    %126 = vector.broadcast %123 : vector<1x32xf32> to vector<8x32xf32>
    %127 = arith.addf %125, %126 : vector<8x32xf32>
    %128 = vector.shape_cast %127 : vector<8x32xf32> to vector<1x8x32xf32>
    %129 = arith.addf %3, %128 : vector<1x8x32xf32>
    %c0_55 = arith.constant 0 : index
    %c0_56 = arith.constant 0 : index
    %c0_57 = arith.constant 0 : index
    %130 = vector.load %arg9[%c0_55, %c0_56, %c0_57] : memref<1x1x32xf32, #tpu.memory_space<vmem>>, vector<1x1x32xf32>
    %131 = vector.shape_cast %130 : vector<1x1x32xf32> to vector<1x32xf32>
    %c0_58 = arith.constant 0 : index
    %c0_59 = arith.constant 0 : index
    %c0_60 = arith.constant 0 : index
    %132 = vector.load %arg10[%c0_58, %c0_59, %c0_60] : memref<1x1x32xf32, #tpu.memory_space<vmem>>, vector<1x1x32xf32>
    %133 = vector.shape_cast %132 : vector<1x1x32xf32> to vector<1x32xf32>
    %cst_61 = arith.constant dense<0.000000e+00> : vector<1x8xf32>
    %134 = vector.multi_reduction <add>, %129, %cst_61 [2] : vector<1x8x32xf32> to vector<1x8xf32>
    %135 = vector.shape_cast %134 : vector<1x8xf32> to vector<1x8x1xf32>
    %cst_62 = arith.constant 3.200000e+01 : f32
    %136 = vector.broadcast %cst_62 : f32 to vector<1x8x1xf32>
    %137 = arith.divf %135, %136 : vector<1x8x1xf32>
    %138 = vector.broadcast %137 : vector<1x8x1xf32> to vector<1x8x32xf32>
    %139 = arith.subf %129, %138 : vector<1x8x32xf32>
    %140 = arith.mulf %139, %139 : vector<1x8x32xf32>
    %cst_63 = arith.constant dense<0.000000e+00> : vector<1x8xf32>
    %141 = vector.multi_reduction <add>, %140, %cst_63 [2] : vector<1x8x32xf32> to vector<1x8xf32>
    %142 = vector.shape_cast %141 : vector<1x8xf32> to vector<1x8x1xf32>
    %cst_64 = arith.constant 3.200000e+01 : f32
    %143 = vector.broadcast %cst_64 : f32 to vector<1x8x1xf32>
    %144 = arith.divf %142, %143 : vector<1x8x1xf32>
    %145 = vector.broadcast %137 : vector<1x8x1xf32> to vector<1x8x32xf32>
    %146 = arith.subf %129, %145 : vector<1x8x32xf32>
    %cst_65 = arith.constant 9.99999974E-6 : f32
    %147 = vector.broadcast %cst_65 : f32 to vector<1x8x1xf32>
    %148 = arith.addf %144, %147 : vector<1x8x1xf32>
    %149 = math.rsqrt %148 : vector<1x8x1xf32>
    %150 = vector.broadcast %149 : vector<1x8x1xf32> to vector<1x8x32xf32>
    %151 = arith.mulf %146, %150 : vector<1x8x32xf32>
    %152 = vector.shape_cast %131 : vector<1x32xf32> to vector<1x1x32xf32>
    %153 = vector.broadcast %152 : vector<1x1x32xf32> to vector<1x8x32xf32>
    %154 = arith.mulf %151, %153 : vector<1x8x32xf32>
    %155 = vector.shape_cast %133 : vector<1x32xf32> to vector<1x1x32xf32>
    %156 = vector.broadcast %155 : vector<1x1x32xf32> to vector<1x8x32xf32>
    %157 = arith.addf %154, %156 : vector<1x8x32xf32>
    %158 = vector.shape_cast %157 : vector<1x8x32xf32> to vector<8x32xf32>
    %c0_66 = arith.constant 0 : index
    %c0_67 = arith.constant 0 : index
    %c0_68 = arith.constant 0 : index
    %159 = vector.load %arg11[%c0_66, %c0_67, %c0_68] : memref<1x32x128xbf16, #tpu.memory_space<vmem>>, vector<1x32x128xbf16>
    %160 = vector.shape_cast %159 : vector<1x32x128xbf16> to vector<32x128xbf16>
    %c0_69 = arith.constant 0 : index
    %c0_70 = arith.constant 0 : index
    %c0_71 = arith.constant 0 : index
    %161 = vector.load %arg12[%c0_69, %c0_70, %c0_71] : memref<1x1x128xf32, #tpu.memory_space<vmem>>, vector<1x1x128xf32>
    %162 = vector.shape_cast %161 : vector<1x1x128xf32> to vector<1x128xf32>
    %163 = arith.truncf %158 : vector<8x32xf32> to vector<8x32xbf16>
    %cst_72 = arith.constant dense<0.000000e+00> : vector<8x128xf32>
    %164 = tpu.matmul %163, %160, %cst_72 {dimension_numbers = #tpu.dot_dimension_numbers<[1], [0], [0], [1], [0, 0, 1, 1], [], []>} : vector<8x32xbf16>, vector<32x128xbf16>, vector<8x128xf32> -> vector<8x128xf32>
    %165 = vector.broadcast %162 : vector<1x128xf32> to vector<8x128xf32>
    %166 = arith.addf %164, %165 : vector<8x128xf32>
    %cst_73 = arith.constant 5.000000e-01 : f32
    %167 = vector.broadcast %cst_73 : f32 to vector<8x128xf32>
    %168 = arith.mulf %167, %166 : vector<8x128xf32>
    %cst_74 = arith.constant 0.707106769 : f32
    %169 = vector.broadcast %cst_74 : f32 to vector<8x128xf32>
    %170 = arith.mulf %166, %169 : vector<8x128xf32>
    %cst_75 = arith.constant 0.000000e+00 : f32
    %171 = vector.broadcast %cst_75 : f32 to vector<8x128xf32>
    %172 = arith.cmpf oge, %170, %171 : vector<8x128xf32>
    %cst_76 = arith.constant 1.000000e+00 : f32
    %cst_77 = arith.constant -1.000000e+00 : f32
    %173 = vector.broadcast %cst_76 : f32 to vector<8x128xf32>
    %174 = vector.broadcast %cst_77 : f32 to vector<8x128xf32>
    %175 = arith.select %172, %173, %174 : vector<8x128xi1>, vector<8x128xf32>
    %176 = math.absf %170 : vector<8x128xf32>
    %cst_78 = arith.constant 0.327591091 : f32
    %177 = vector.broadcast %cst_78 : f32 to vector<8x128xf32>
    %178 = arith.mulf %177, %176 : vector<8x128xf32>
    %cst_79 = arith.constant 1.000000e+00 : f32
    %179 = vector.broadcast %cst_79 : f32 to vector<8x128xf32>
    %180 = arith.addf %179, %178 : vector<8x128xf32>
    %181 = tpu.reciprocal %180 : vector<8x128xf32> -> vector<8x128xf32>
    %cst_80 = arith.constant 1.06140542 : f32
    %182 = vector.broadcast %cst_80 : f32 to vector<8x128xf32>
    %183 = arith.mulf %182, %181 : vector<8x128xf32>
    %cst_81 = arith.constant -1.45315206 : f32
    %184 = vector.broadcast %cst_81 : f32 to vector<8x128xf32>
    %185 = arith.addf %183, %184 : vector<8x128xf32>
    %186 = arith.mulf %185, %181 : vector<8x128xf32>
    %cst_82 = arith.constant 1.42141378 : f32
    %187 = vector.broadcast %cst_82 : f32 to vector<8x128xf32>
    %188 = arith.addf %186, %187 : vector<8x128xf32>
    %189 = arith.mulf %188, %181 : vector<8x128xf32>
    %cst_83 = arith.constant -0.284496725 : f32
    %190 = vector.broadcast %cst_83 : f32 to vector<8x128xf32>
    %191 = arith.addf %189, %190 : vector<8x128xf32>
    %192 = arith.mulf %191, %181 : vector<8x128xf32>
    %cst_84 = arith.constant 0.254829586 : f32
    %193 = vector.broadcast %cst_84 : f32 to vector<8x128xf32>
    %194 = arith.addf %192, %193 : vector<8x128xf32>
    %195 = arith.mulf %194, %181 : vector<8x128xf32>
    %cst_85 = arith.constant 0.000000e+00 : f32
    %196 = vector.broadcast %cst_85 : f32 to vector<8x128xf32>
    %197 = arith.subf %196, %176 : vector<8x128xf32>
    %198 = arith.mulf %197, %176 : vector<8x128xf32>
    %199 = math.exp %198 : vector<8x128xf32>
    %200 = arith.mulf %195, %199 : vector<8x128xf32>
    %cst_86 = arith.constant 1.000000e+00 : f32
    %201 = vector.broadcast %cst_86 : f32 to vector<8x128xf32>
    %202 = arith.subf %201, %200 : vector<8x128xf32>
    %203 = arith.mulf %175, %202 : vector<8x128xf32>
    %cst_87 = arith.constant 1.000000e+00 : f32
    %204 = vector.broadcast %cst_87 : f32 to vector<8x128xf32>
    %205 = arith.addf %204, %203 : vector<8x128xf32>
    %206 = arith.mulf %168, %205 : vector<8x128xf32>
    %c0_88 = arith.constant 0 : index
    %c0_89 = arith.constant 0 : index
    %c0_90 = arith.constant 0 : index
    %207 = vector.load %arg13[%c0_88, %c0_89, %c0_90] : memref<1x128x32xbf16, #tpu.memory_space<vmem>>, vector<1x128x32xbf16>
    %208 = vector.shape_cast %207 : vector<1x128x32xbf16> to vector<128x32xbf16>
    %c0_91 = arith.constant 0 : index
    %c0_92 = arith.constant 0 : index
    %c0_93 = arith.constant 0 : index
    %209 = vector.load %arg14[%c0_91, %c0_92, %c0_93] : memref<1x1x32xf32, #tpu.memory_space<vmem>>, vector<1x1x32xf32>
    %210 = vector.shape_cast %209 : vector<1x1x32xf32> to vector<1x32xf32>
    %211 = arith.truncf %206 : vector<8x128xf32> to vector<8x128xbf16>
    %cst_94 = arith.constant dense<0.000000e+00> : vector<8x32xf32>
    %212 = tpu.matmul %211, %208, %cst_94 {dimension_numbers = #tpu.dot_dimension_numbers<[1], [0], [0], [1], [0, 0, 1, 1], [], []>} : vector<8x128xbf16>, vector<128x32xbf16>, vector<8x32xf32> -> vector<8x32xf32>
    %213 = vector.broadcast %210 : vector<1x32xf32> to vector<8x32xf32>
    %214 = arith.addf %212, %213 : vector<8x32xf32>
    %215 = vector.shape_cast %214 : vector<8x32xf32> to vector<1x8x32xf32>
    %216 = arith.addf %129, %215 : vector<1x8x32xf32>
    %c0_95 = arith.constant 0 : index
    %c0_96 = arith.constant 0 : index
    %c0_97 = arith.constant 0 : index
    %217 = vector.load %arg20[%c0_95, %c0_96, %c0_97] : memref<1x8x32xf32, #tpu.memory_space<vmem>>, vector<1x8x32xf32>
    tpu.vector_store %arg20[%c0_95, %c0_96, %c0_97], %216 {strides = array<i32>} : memref<1x8x32xf32, #tpu.memory_space<vmem>>, vector<1x8x32xf32>,
    %c1_i32 = arith.constant 1 : i32
    %218 = arith.cmpi eq, %arg1, %c1_i32 : i32
    %219 = arith.extui %218 : i1 to i32
    %c0_i32_98 = arith.constant 0 : i32
    %220 = arith.cmpi ne, %219, %c0_i32_98 : i32
    scf.if %220 {
      %c0_99 = arith.constant 0 : index
      %c0_100 = arith.constant 0 : index
      %221 = vector.load %arg15[%c0_99, %c0_100] : memref<1x32xf32, #tpu.memory_space<vmem>>, vector<1x32xf32>
      %c0_101 = arith.constant 0 : index
      %c0_102 = arith.constant 0 : index
      %222 = vector.load %arg16[%c0_101, %c0_102] : memref<1x32xf32, #tpu.memory_space<vmem>>, vector<1x32xf32>
      %cst_103 = arith.constant dense<0.000000e+00> : vector<1x8xf32>
      %223 = vector.multi_reduction <add>, %216, %cst_103 [2] : vector<1x8x32xf32> to vector<1x8xf32>
      %224 = vector.shape_cast %223 : vector<1x8xf32> to vector<1x8x1xf32>
      %cst_104 = arith.constant 3.200000e+01 : f32
      %225 = vector.broadcast %cst_104 : f32 to vector<1x8x1xf32>
      %226 = arith.divf %224, %225 : vector<1x8x1xf32>
      %227 = vector.broadcast %226 : vector<1x8x1xf32> to vector<1x8x32xf32>
      %228 = arith.subf %216, %227 : vector<1x8x32xf32>
      %229 = arith.mulf %228, %228 : vector<1x8x32xf32>
      %cst_105 = arith.constant dense<0.000000e+00> : vector<1x8xf32>
      %230 = vector.multi_reduction <add>, %229, %cst_105 [2] : vector<1x8x32xf32> to vector<1x8xf32>
      %231 = vector.shape_cast %230 : vector<1x8xf32> to vector<1x8x1xf32>
      %cst_106 = arith.constant 3.200000e+01 : f32
      %232 = vector.broadcast %cst_106 : f32 to vector<1x8x1xf32>
      %233 = arith.divf %231, %232 : vector<1x8x1xf32>
      %234 = vector.broadcast %226 : vector<1x8x1xf32> to vector<1x8x32xf32>
      %235 = arith.subf %216, %234 : vector<1x8x32xf32>
      %cst_107 = arith.constant 9.99999974E-6 : f32
      %236 = vector.broadcast %cst_107 : f32 to vector<1x8x1xf32>
      %237 = arith.addf %233, %236 : vector<1x8x1xf32>
      %238 = math.rsqrt %237 : vector<1x8x1xf32>
      %239 = vector.broadcast %238 : vector<1x8x1xf32> to vector<1x8x32xf32>
      %240 = arith.mulf %235, %239 : vector<1x8x32xf32>
      %241 = vector.shape_cast %221 : vector<1x32xf32> to vector<1x1x32xf32>
      %242 = vector.broadcast %241 : vector<1x1x32xf32> to vector<1x8x32xf32>
      %243 = arith.mulf %240, %242 : vector<1x8x32xf32>
      %244 = vector.shape_cast %222 : vector<1x32xf32> to vector<1x1x32xf32>
      %245 = vector.broadcast %244 : vector<1x1x32xf32> to vector<1x8x32xf32>
      %246 = arith.addf %243, %245 : vector<1x8x32xf32>
      %247 = vector.shape_cast %246 : vector<1x8x32xf32> to vector<8x32xf32>
      %c0_108 = arith.constant 0 : index
      %c0_109 = arith.constant 0 : index
      %248 = vector.load %arg17[%c0_108, %c0_109] : memref<32x128xbf16, #tpu.memory_space<vmem>>, vector<32x128xbf16>
      %c0_110 = arith.constant 0 : index
      %c0_111 = arith.constant 0 : index
      %249 = vector.load %arg18[%c0_110, %c0_111] : memref<1x128xf32, #tpu.memory_space<vmem>>, vector<1x128xf32>
      %250 = arith.truncf %247 : vector<8x32xf32> to vector<8x32xbf16>
      %cst_112 = arith.constant dense<0.000000e+00> : vector<8x128xf32>
      %251 = tpu.matmul %250, %248, %cst_112 {dimension_numbers = #tpu.dot_dimension_numbers<[1], [0], [0], [1], [0, 0, 1, 1], [], []>} : vector<8x32xbf16>, vector<32x128xbf16>, vector<8x128xf32> -> vector<8x128xf32>
      %252 = vector.broadcast %249 : vector<1x128xf32> to vector<8x128xf32>
      %253 = arith.addf %251, %252 : vector<8x128xf32>
      %254 = vector.shape_cast %253 : vector<8x128xf32> to vector<1x8x128xf32>
      %c0_113 = arith.constant 0 : index
      %c0_114 = arith.constant 0 : index
      %c0_115 = arith.constant 0 : index
      %255 = vector.load %arg19[%c0_113, %c0_114, %c0_115] : memref<1x8x128xf32, #tpu.memory_space<vmem>>, vector<1x8x128xf32>
      tpu.vector_store %arg19[%c0_113, %c0_114, %c0_115], %254 {strides = array<i32>} : memref<1x8x128xf32, #tpu.memory_space<vmem>>, vector<1x8x128xf32>,
    } else {
    }
    return
  }
  func.func @transform_0(%arg0: i32, %arg1: i32) -> (i32, i32, i32) {
    %c0_i32 = arith.constant 0 : i32
    %c0_i32_0 = arith.constant 0 : i32
    %c0_i32_1 = arith.constant 0 : i32
    return %arg0, %c0_i32, %c0_i32_0 : i32, i32, i32
  }
  func.func @transform_1(%arg0: i32, %arg1: i32) -> (i32, i32, i32) {
    %c0_i32 = arith.constant 0 : i32
    %c0_i32_0 = arith.constant 0 : i32
    %c0_i32_1 = arith.constant 0 : i32
    return %arg1, %c0_i32, %c0_i32_0 : i32, i32, i32
  }
  func.func @transform_2(%arg0: i32, %arg1: i32) -> (i32, i32, i32) {
    %c0_i32 = arith.constant 0 : i32
    %c0_i32_0 = arith.constant 0 : i32
    %c0_i32_1 = arith.constant 0 : i32
    return %arg1, %c0_i32, %c0_i32_0 : i32, i32, i32
  }
  func.func @transform_3(%arg0: i32, %arg1: i32) -> (i32, i32, i32) {
    %c0_i32 = arith.constant 0 : i32
    %c0_i32_0 = arith.constant 0 : i32
    %c0_i32_1 = arith.constant 0 : i32
    return %arg1, %c0_i32, %c0_i32_0 : i32, i32, i32
  }
  func.func @transform_4(%arg0: i32, %arg1: i32) -> (i32, i32, i32) {
    %c0_i32 = arith.constant 0 : i32
    %c0_i32_0 = arith.constant 0 : i32
    %c0_i32_1 = arith.constant 0 : i32
    return %arg1, %c0_i32, %c0_i32_0 : i32, i32, i32
  }
  func.func @transform_5(%arg0: i32, %arg1: i32) -> (i32, i32, i32) {
    %c0_i32 = arith.constant 0 : i32
    %c0_i32_0 = arith.constant 0 : i32
    %c0_i32_1 = arith.constant 0 : i32
    return %arg1, %c0_i32, %c0_i32_0 : i32, i32, i32
  }
  func.func @transform_6(%arg0: i32, %arg1: i32) -> (i32, i32, i32) {
    %c0_i32 = arith.constant 0 : i32
    %c0_i32_0 = arith.constant 0 : i32
    %c0_i32_1 = arith.constant 0 : i32
    return %arg1, %c0_i32, %c0_i32_0 : i32, i32, i32
  }
  func.func @transform_7(%arg0: i32, %arg1: i32) -> (i32, i32, i32) {
    %c0_i32 = arith.constant 0 : i32
    %c0_i32_0 = arith.constant 0 : i32
    %c0_i32_1 = arith.constant 0 : i32
    return %arg1, %c0_i32, %c0_i32_0 : i32, i32, i32
  }
  func.func @transform_8(%arg0: i32, %arg1: i32) -> (i32, i32, i32) {
    %c0_i32 = arith.constant 0 : i32
    %c0_i32_0 = arith.constant 0 : i32
    %c0_i32_1 = arith.constant 0 : i32
    return %arg1, %c0_i32, %c0_i32_0 : i32, i32, i32
  }
  func.func @transform_9(%arg0: i32, %arg1: i32) -> (i32, i32, i32) {
    %c0_i32 = arith.constant 0 : i32
    %c0_i32_0 = arith.constant 0 : i32
    %c0_i32_1 = arith.constant 0 : i32
    return %arg1, %c0_i32, %c0_i32_0 : i32, i32, i32
  }
  func.func @transform_10(%arg0: i32, %arg1: i32) -> (i32, i32, i32) {
    %c0_i32 = arith.constant 0 : i32
    %c0_i32_0 = arith.constant 0 : i32
    %c0_i32_1 = arith.constant 0 : i32
    return %arg1, %c0_i32, %c0_i32_0 : i32, i32, i32
  }
  func.func @transform_11(%arg0: i32, %arg1: i32) -> (i32, i32, i32) {
    %c0_i32 = arith.constant 0 : i32
    %c0_i32_0 = arith.constant 0 : i32
    %c0_i32_1 = arith.constant 0 : i32
    return %arg1, %c0_i32, %c0_i32_0 : i32, i32, i32
  }
  func.func @transform_12(%arg0: i32, %arg1: i32) -> (i32, i32, i32) {
    %c0_i32 = arith.constant 0 : i32
    %c0_i32_0 = arith.constant 0 : i32
    %c0_i32_1 = arith.constant 0 : i32
    return %arg1, %c0_i32, %c0_i32_0 : i32, i32, i32
  }
  func.func @transform_13(%arg0: i32, %arg1: i32) -> (i32, i32) {
    %c0_i32 = arith.constant 0 : i32
    %c0_i32_0 = arith.constant 0 : i32
    %c0_i32_1 = arith.constant 0 : i32
    return %c0_i32, %c0_i32_0 : i32, i32
  }
  func.func @transform_14(%arg0: i32, %arg1: i32) -> (i32, i32) {
    %c0_i32 = arith.constant 0 : i32
    %c0_i32_0 = arith.constant 0 : i32
    %c0_i32_1 = arith.constant 0 : i32
    return %c0_i32, %c0_i32_0 : i32, i32
  }
  func.func @transform_15(%arg0: i32, %arg1: i32) -> (i32, i32) {
    %c0_i32 = arith.constant 0 : i32
    %c0_i32_0 = arith.constant 0 : i32
    %c0_i32_1 = arith.constant 0 : i32
    return %c0_i32, %c0_i32_0 : i32, i32
  }
  func.func @transform_16(%arg0: i32, %arg1: i32) -> (i32, i32) {
    %c0_i32 = arith.constant 0 : i32
    %c0_i32_0 = arith.constant 0 : i32
    %c0_i32_1 = arith.constant 0 : i32
    return %c0_i32, %c0_i32_0 : i32, i32
  }
  func.func @transform_17(%arg0: i32, %arg1: i32) -> (i32, i32, i32) {
    %c0_i32 = arith.constant 0 : i32
    %c0_i32_0 = arith.constant 0 : i32
    %c0_i32_1 = arith.constant 0 : i32
    return %arg0, %c0_i32, %c0_i32_0 : i32, i32, i32
  }
}

</mosaic_0001>

<llo_original>
// kernel: tpu_custom_call.1
$region0: #{tpu_custom_call.1}
  #allocation0 [shape = 'u32[]', space=smem, size = 0x4, offset = 0x4, fixed_abs, tag = 'smem constant byte address 0x4 - core index']
  #allocation1 [shape = 'u32[144,128]{1,0:T(1,128)}', space=vmem, size = 0x12000, scoped, tag = 'internal scratch']
  #allocation2 [shape = 'f32[1,8,32]{2,1,0:T(8,128)}', space=vmem, size = 0x1000, scoped, tag = 'scratch operand']
  #allocation3 [shape = 'f32[1,8,32]{2,1,0:T(8,128)}', space=vmem, size = 0x1000, scoped, tag = 'scratch operand']
  %s0 = inlined_call_operand.vmem [shape: f32[2,8,32], index: 0, kind: input, shape index: {}]
  %s1 = inlined_call_operand.vmem [shape: f32[2,1,32], index: 1, kind: input, shape index: {}]
  %s2 = inlined_call_operand.vmem [shape: f32[2,1,32], index: 2, kind: input, shape index: {}]
  %s3 = inlined_call_operand.vmem [shape: bf16[2,32,96], index: 3, kind: input, shape index: {}]
  %s4 = inlined_call_operand.vmem [shape: f32[2,1,96], index: 4, kind: input, shape index: {}]
  %s5 = inlined_call_operand.vmem [shape: bf16[2,32,32], index: 5, kind: input, shape index: {}]
  %s6 = inlined_call_operand.vmem [shape: f32[2,1,32], index: 6, kind: input, shape index: {}]
  %s7 = inlined_call_operand.vmem [shape: f32[2,1,32], index: 7, kind: input, shape index: {}]
  %s8 = inlined_call_operand.vmem [shape: f32[2,1,32], index: 8, kind: input, shape index: {}]
  %s9 = inlined_call_operand.vmem [shape: bf16[2,32,128], index: 9, kind: input, shape index: {}]
  %s10 = inlined_call_operand.vmem [shape: f32[2,1,128], index: 10, kind: input, shape index: {}]
  %s11 = inlined_call_operand.vmem [shape: bf16[2,128,32], index: 11, kind: input, shape index: {}]
  %s12 = inlined_call_operand.vmem [shape: f32[2,1,32], index: 12, kind: input, shape index: {}]
  %s13 = inlined_call_operand.vmem [shape: f32[1,32], index: 13, kind: input, shape index: {}]
  %s14 = inlined_call_operand.vmem [shape: f32[1,32], index: 14, kind: input, shape index: {}]
  %s15 = inlined_call_operand.vmem [shape: bf16[32,128], index: 15, kind: input, shape index: {}]
  %s16 = inlined_call_operand.vmem [shape: f32[1,128], index: 16, kind: input, shape index: {}]
  %s17 = inlined_call_operand.hbm [shape: f32[2,8,128], index: 17, kind: output, shape index: {}]
  %s18 = sld [smem:[#allocation0]]
  $region109: #{tpu_custom_call.1} parent=0
    _
  %s20 = ssub.s32 1, %s18
  %s21 = scalar_select 0, %s20, %s18
  $region1: #{tpu_custom_call.1} parent=0
    #allocation4 [shape = 'u8[8192]{0}', space=vmem, size = 0x2000, scoped, tag = 'output window, operand 0']
    #allocation5 [shape = 's32[2]{0}', space=sflag, size = 0x8, scoped, tag = 'scoped memory for tpu_custom_call.1']
    %22 = vsyncpa [#allocation5], 0
    %s23 = scalar_lea.sflag [#allocation5], 1
    %24 = vsyncpa %s23, 0
    loop: start=0, step=1, limit=6
    $region2: #{tpu_custom_call.1} parent=1 // loop_pre_header
      _
    $region3: #{tpu_custom_call.1} parent=1 // loop_header
      %s26 = sphi 0, %s30
      %p27 = scmp.ge.s32.totalorder %s26, 6
      %s33 = sphi 0, %s45
      %s34 = sphi 0, %s41
      %s35 = sphi 0, %s33
      %s36 = sphi 0, %s34
      %s37 = sphi 0, %s35
      %s38 = sphi 0, %s36
      %s48 = sphi 0, %s50
      %s51 = sphi 0, %s48
      %s52 = sphi 0, %s51
      %s68 = sphi 0, %s52
      %s74 = sphi 0, %s76
      %s77 = sphi 0, %s74
      %s78 = sphi 0, %s77
      %s94 = sphi 0, %s78
      %s100 = sphi 0, %s102
      %s103 = sphi 0, %s100
      %s104 = sphi 0, %s103
      %s120 = sphi 0, %s104
      %s126 = sphi 0, %s128
      %s129 = sphi 0, %s126
      %s130 = sphi 0, %s129
      %s146 = sphi 0, %s130
      %s152 = sphi 0, %s154
      %s155 = sphi 0, %s152
      %s156 = sphi 0, %s155
      %s172 = sphi 0, %s156
      %s178 = sphi 0, %s180
      %s181 = sphi 0, %s178
      %s182 = sphi 0, %s181
      %s198 = sphi 0, %s182
      %s204 = sphi 0, %s206
      %s207 = sphi 0, %s204
      %s208 = sphi 0, %s207
      %s224 = sphi 0, %s208
      %s230 = sphi 0, %s232
      %s233 = sphi 0, %s230
      %s234 = sphi 0, %s233
      %s250 = sphi 0, %s234
      %s256 = sphi 0, %s258
      %s259 = sphi 0, %s256
      %s260 = sphi 0, %s259
      %s276 = sphi 0, %s260
      %s282 = sphi 0, %s284
      %s285 = sphi 0, %s282
      %s286 = sphi 0, %s285
      %s302 = sphi 0, %s286
      %s308 = sphi 0, %s310
      %s311 = sphi 0, %s308
      %s312 = sphi 0, %s311
      %s328 = sphi 0, %s312
      %s334 = sphi 0, %s336
      %s337 = sphi 0, %s334
      %s338 = sphi 0, %s337
      %s354 = sphi 0, %s338
      %s360 = sphi 0, %s362
      %s363 = sphi 0, %s360
      %s364 = sphi 0, %s363
      %s380 = sphi 0, %s364
      %s384 = sphi 0, %s384
      %s386 = sphi 0, %s384
      %s387 = sphi 0, %s386
      %s401 = sphi 0, %s387
      %s405 = sphi 0, %s405
      %s407 = sphi 0, %s405
      %s408 = sphi 0, %s407
      %s422 = sphi 0, %s408
      %s426 = sphi 0, %s426
      %s428 = sphi 0, %s426
      %s429 = sphi 0, %s428
      %s443 = sphi 0, %s429
      %s447 = sphi 0, %s447
      %s449 = sphi 0, %s447
      %s450 = sphi 0, %s449
      %s464 = sphi 0, %s450
      %s470 = sphi 0, %s472
      %s473 = sphi 0, %s470
      %s474 = sphi 0, %s473
      %s490 = sphi 0, %s474
    $region4: #{tpu_custom_call.1} parent=1 // loop_header_branch
      %29 = sbr.rel (%p27) target = $region8
    $region5: #{tpu_custom_call.1} parent=1 // loop_body
      %s31 = ssub.s32 %s26, 1
      %s32 = ssub.s32 %s26, 2
      %s39 = sadd.s32 1, %s34
      %p40 = scmp.ge.s32.totalorder %s39, 2
      %s41 = scalar_select %p40, 0, %s39
      %s42 = sadd.s32 1, %s33
      %s43 = scalar_select %p40, %s42, %s33
      %p44 = scmp.ge.s32.totalorder %s43, 2
      %s45 = scalar_select %p44, 0, %s43
      %s46 = ssub.s32 %s33, %s45
      %p47 = scmp.eq.s32.totalorder %s46, 0
      %s49 = sadd.s32 %s48, 1
      %s50 = scalar_select %p47, %s48, %s49
      %p53 = pneg %p47
      %p54 = scmp.eq.s32.totalorder %s26, 3
      %p55 = por %p53, %p54
      %p56 = scmp.ne.s32.totalorder %s48, %s51
      %p57 = scmp.eq.s32.totalorder %s26, 0
      %p58 = por %p56, %p57
      %p59 = scmp.ne.s32.totalorder %s48, %s51
      %p60 = scmp.eq.s32.totalorder %s31, 3
      %p61 = por %p59, %p60
      %p62 = scmp.ne.s32.totalorder %s51, %s52
      %p63 = scmp.eq.s32.totalorder %s31, 0
      %p64 = por %p62, %p63
      %p65 = scmp.ne.s32.totalorder %s51, %s52
      %p66 = scmp.eq.s32.totalorder %s32, 3
      %p67 = por %p65, %p66
      %p69 = scmp.ne.s32.totalorder %s52, %s68
      %p70 = scmp.eq.s32.totalorder %s32, 0
      %p71 = por %p69, %p70
      %s72 = ssub.s32 %s34, %s41
      %p73 = scmp.eq.s32.totalorder %s72, 0
      %s75 = sadd.s32 %s74, 1
      %s76 = scalar_select %p73, %s74, %s75
      %p79 = pneg %p73
      %p80 = scmp.eq.s32.totalorder %s26, 3
      %p81 = por %p79, %p80
      %p82 = scmp.ne.s32.totalorder %s74, %s77
      %p83 = scmp.eq.s32.totalorder %s26, 0
      %p84 = por %p82, %p83
      %p85 = scmp.ne.s32.totalorder %s74, %s77
      %p86 = scmp.eq.s32.totalorder %s31, 3
      %p87 = por %p85, %p86
      %p88 = scmp.ne.s32.totalorder %s77, %s78
      %p89 = scmp.eq.s32.totalorder %s31, 0
      %p90 = por %p88, %p89
      %p91 = scmp.ne.s32.totalorder %s77, %s78
      %p92 = scmp.eq.s32.totalorder %s32, 3
      %p93 = por %p91, %p92
      %p95 = scmp.ne.s32.totalorder %s78, %s94
      %p96 = scmp.eq.s32.totalorder %s32, 0
      %p97 = por %p95, %p96
      %s98 = ssub.s32 %s34, %s41
      %p99 = scmp.eq.s32.totalorder %s98, 0
      %s101 = sadd.s32 %s100, 1
      %s102 = scalar_select %p99, %s100, %s101
      %p105 = pneg %p99
      %p106 = scmp.eq.s32.totalorder %s26, 3
      %p107 = por %p105, %p106
      %p108 = scmp.ne.s32.totalorder %s100, %s103
      %p109 = scmp.eq.s32.totalorder %s26, 0
      %p110 = por %p108, %p109
      %p111 = scmp.ne.s32.totalorder %s100, %s103
      %p112 = scmp.eq.s32.totalorder %s31, 3
      %p113 = por %p111, %p112
      %p114 = scmp.ne.s32.totalorder %s103, %s104
      %p115 = scmp.eq.s32.totalorder %s31, 0
      %p116 = por %p114, %p115
      %p117 = scmp.ne.s32.totalorder %s103, %s104
      %p118 = scmp.eq.s32.totalorder %s32, 3
      %p119 = por %p117, %p118
      %p121 = scmp.ne.s32.totalorder %s104, %s120
      %p122 = scmp.eq.s32.totalorder %s32, 0
      %p123 = por %p121, %p122
      %s124 = ssub.s32 %s34, %s41
      %p125 = scmp.eq.s32.totalorder %s124, 0
      %s127 = sadd.s32 %s126, 1
      %s128 = scalar_select %p125, %s126, %s127
      %p131 = pneg %p125
      %p132 = scmp.eq.s32.totalorder %s26, 3
      %p133 = por %p131, %p132
      %p134 = scmp.ne.s32.totalorder %s126, %s129
      %p135 = scmp.eq.s32.totalorder %s26, 0
      %p136 = por %p134, %p135
      %p137 = scmp.ne.s32.totalorder %s126, %s129
      %p138 = scmp.eq.s32.totalorder %s31, 3
      %p139 = por %p137, %p138
      %p140 = scmp.ne.s32.totalorder %s129, %s130
      %p141 = scmp.eq.s32.totalorder %s31, 0
      %p142 = por %p140, %p141
      %p143 = scmp.ne.s32.totalorder %s129, %s130
      %p144 = scmp.eq.s32.totalorder %s32, 3
      %p145 = por %p143, %p144
      %p147 = scmp.ne.s32.totalorder %s130, %s146
      %p148 = scmp.eq.s32.totalorder %s32, 0
      %p149 = por %p147, %p148
      %s150 = ssub.s32 %s34, %s41
      %p151 = scmp.eq.s32.totalorder %s150, 0
      %s153 = sadd.s32 %s152, 1
      %s154 = scalar_select %p151, %s152, %s153
      %p157 = pneg %p151
      %p158 = scmp.eq.s32.totalorder %s26, 3
      %p159 = por %p157, %p158
      %p160 = scmp.ne.s32.totalorder %s152, %s155
      %p161 = scmp.eq.s32.totalorder %s26, 0
      %p162 = por %p160, %p161
      %p163 = scmp.ne.s32.totalorder %s152, %s155
      %p164 = scmp.eq.s32.totalorder %s31, 3
      %p165 = por %p163, %p164
      %p166 = scmp.ne.s32.totalorder %s155, %s156
      %p167 = scmp.eq.s32.totalorder %s31, 0
      %p168 = por %p166, %p167
      %p169 = scmp.ne.s32.totalorder %s155, %s156
      %p170 = scmp.eq.s32.totalorder %s32, 3
      %p171 = por %p169, %p170
      %p173 = scmp.ne.s32.totalorder %s156, %s172
      %p174 = scmp.eq.s32.totalorder %s32, 0
      %p175 = por %p173, %p174
      %s176 = ssub.s32 %s34, %s41
      %p177 = scmp.eq.s32.totalorder %s176, 0
      %s179 = sadd.s32 %s178, 1
      %s180 = scalar_select %p177, %s178, %s179
      %p183 = pneg %p177
      %p184 = scmp.eq.s32.totalorder %s26, 3
      %p185 = por %p183, %p184
      %p186 = scmp.ne.s32.totalorder %s178, %s181
      %p187 = scmp.eq.s32.totalorder %s26, 0
      %p188 = por %p186, %p187
      %p189 = scmp.ne.s32.totalorder %s178, %s181
      %p190 = scmp.eq.s32.totalorder %s31, 3
      %p191 = por %p189, %p190
      %p192 = scmp.ne.s32.totalorder %s181, %s182
      %p193 = scmp.eq.s32.totalorder %s31, 0
      %p194 = por %p192, %p193
      %p195 = scmp.ne.s32.totalorder %s181, %s182
      %p196 = scmp.eq.s32.totalorder %s32, 3
      %p197 = por %p195, %p196
      %p199 = scmp.ne.s32.totalorder %s182, %s198
      %p200 = scmp.eq.s32.totalorder %s32, 0
      %p201 = por %p199, %p200
      %s202 = ssub.s32 %s34, %s41
      %p203 = scmp.eq.s32.totalorder %s202, 0
      %s205 = sadd.s32 %s204, 1
      %s206 = scalar_select %p203, %s204, %s205
      %p209 = pneg %p203
      %p210 = scmp.eq.s32.totalorder %s26, 3
      %p211 = por %p209, %p210
      %p212 = scmp.ne.s32.totalorder %s204, %s207
      %p213 = scmp.eq.s32.totalorder %s26, 0
      %p214 = por %p212, %p213
      %p215 = scmp.ne.s32.totalorder %s204, %s207
      %p216 = scmp.eq.s32.totalorder %s31, 3
      %p217 = por %p215, %p216
      %p218 = scmp.ne.s32.totalorder %s207, %s208
      %p219 = scmp.eq.s32.totalorder %s31, 0
      %p220 = por %p218, %p219
      %p221 = scmp.ne.s32.totalorder %s207, %s208
      %p222 = scmp.eq.s32.totalorder %s32, 3
      %p223 = por %p221, %p222
      %p225 = scmp.ne.s32.totalorder %s208, %s224
      %p226 = scmp.eq.s32.totalorder %s32, 0
      %p227 = por %p225, %p226
      %s228 = ssub.s32 %s34, %s41
      %p229 = scmp.eq.s32.totalorder %s228, 0
      %s231 = sadd.s32 %s230, 1
      %s232 = scalar_select %p229, %s230, %s231
      %p235 = pneg %p229
      %p236 = scmp.eq.s32.totalorder %s26, 3
      %p237 = por %p235, %p236
      %p238 = scmp.ne.s32.totalorder %s230, %s233
      %p239 = scmp.eq.s32.totalorder %s26, 0
      %p240 = por %p238, %p239
      %p241 = scmp.ne.s32.totalorder %s230, %s233
      %p242 = scmp.eq.s32.totalorder %s31, 3
      %p243 = por %p241, %p242
      %p244 = scmp.ne.s32.totalorder %s233, %s234
      %p245 = scmp.eq.s32.totalorder %s31, 0
      %p246 = por %p244, %p245
      %p247 = scmp.ne.s32.totalorder %s233, %s234
      %p248 = scmp.eq.s32.totalorder %s32, 3
      %p249 = por %p247, %p248
      %p251 = scmp.ne.s32.totalorder %s234, %s250
      %p252 = scmp.eq.s32.totalorder %s32, 0
      %p253 = por %p251, %p252
      %s254 = ssub.s32 %s34, %s41
      %p255 = scmp.eq.s32.totalorder %s254, 0
      %s257 = sadd.s32 %s256, 1
      %s258 = scalar_select %p255, %s256, %s257
      %p261 = pneg %p255
      %p262 = scmp.eq.s32.totalorder %s26, 3
      %p263 = por %p261, %p262
      %p264 = scmp.ne.s32.totalorder %s256, %s259
      %p265 = scmp.eq.s32.totalorder %s26, 0
      %p266 = por %p264, %p265
      %p267 = scmp.ne.s32.totalorder %s256, %s259
      %p268 = scmp.eq.s32.totalorder %s31, 3
      %p269 = por %p267, %p268
      %p270 = scmp.ne.s32.totalorder %s259, %s260
      %p271 = scmp.eq.s32.totalorder %s31, 0
      %p272 = por %p270, %p271
      %p273 = scmp.ne.s32.totalorder %s259, %s260
      %p274 = scmp.eq.s32.totalorder %s32, 3
      %p275 = por %p273, %p274
      %p277 = scmp.ne.s32.totalorder %s260, %s276
      %p278 = scmp.eq.s32.totalorder %s32, 0
      %p279 = por %p277, %p278
      %s280 = ssub.s32 %s34, %s41
      %p281 = scmp.eq.s32.totalorder %s280, 0
      %s283 = sadd.s32 %s282, 1
      %s284 = scalar_select %p281, %s282, %s283
      %p287 = pneg %p281
      %p288 = scmp.eq.s32.totalorder %s26, 3
      %p289 = por %p287, %p288
      %p290 = scmp.ne.s32.totalorder %s282, %s285
      %p291 = scmp.eq.s32.totalorder %s26, 0
      %p292 = por %p290, %p291
      %p293 = scmp.ne.s32.totalorder %s282, %s285
      %p294 = scmp.eq.s32.totalorder %s31, 3
      %p295 = por %p293, %p294
      %p296 = scmp.ne.s32.totalorder %s285, %s286
      %p297 = scmp.eq.s32.totalorder %s31, 0
      %p298 = por %p296, %p297
      %p299 = scmp.ne.s32.totalorder %s285, %s286
      %p300 = scmp.eq.s32.totalorder %s32, 3
      %p301 = por %p299, %p300
      %p303 = scmp.ne.s32.totalorder %s286, %s302
      %p304 = scmp.eq.s32.totalorder %s32, 0
      %p305 = por %p303, %p304
      %s306 = ssub.s32 %s34, %s41
      %p307 = scmp.eq.s32.totalorder %s306, 0
      %s309 = sadd.s32 %s308, 1
      %s310 = scalar_select %p307, %s308, %s309
      %p313 = pneg %p307
      %p314 = scmp.eq.s32.totalorder %s26, 3
      %p315 = por %p313, %p314
      %p316 = scmp.ne.s32.totalorder %s308, %s311
      %p317 = scmp.eq.s32.totalorder %s26, 0
      %p318 = por %p316, %p317
      %p319 = scmp.ne.s32.totalorder %s308, %s311
      %p320 = scmp.eq.s32.totalorder %s31, 3
      %p321 = por %p319, %p320
      %p322 = scmp.ne.s32.totalorder %s311, %s312
      %p323 = scmp.eq.s32.totalorder %s31, 0
      %p324 = por %p322, %p323
      %p325 = scmp.ne.s32.totalorder %s311, %s312
      %p326 = scmp.eq.s32.totalorder %s32, 3
      %p327 = por %p325, %p326
      %p329 = scmp.ne.s32.totalorder %s312, %s328
      %p330 = scmp.eq.s32.totalorder %s32, 0
      %p331 = por %p329, %p330
      %s332 = ssub.s32 %s34, %s41
      %p333 = scmp.eq.s32.totalorder %s332, 0
      %s335 = sadd.s32 %s334, 1
      %s336 = scalar_select %p333, %s334, %s335
      %p339 = pneg %p333
      %p340 = scmp.eq.s32.totalorder %s26, 3
      %p341 = por %p339, %p340
      %p342 = scmp.ne.s32.totalorder %s334, %s337
      %p343 = scmp.eq.s32.totalorder %s26, 0
      %p344 = por %p342, %p343
      %p345 = scmp.ne.s32.totalorder %s334, %s337
      %p346 = scmp.eq.s32.totalorder %s31, 3
      %p347 = por %p345, %p346
      %p348 = scmp.ne.s32.totalorder %s337, %s338
      %p349 = scmp.eq.s32.totalorder %s31, 0
      %p350 = por %p348, %p349
      %p351 = scmp.ne.s32.totalorder %s337, %s338
      %p352 = scmp.eq.s32.totalorder %s32, 3
      %p353 = por %p351, %p352
      %p355 = scmp.ne.s32.totalorder %s338, %s354
      %p356 = scmp.eq.s32.totalorder %s32, 0
      %p357 = por %p355, %p356
      %s358 = ssub.s32 %s34, %s41
      %p359 = scmp.eq.s32.totalorder %s358, 0
      %s361 = sadd.s32 %s360, 1
      %s362 = scalar_select %p359, %s360, %s361
      %p365 = pneg %p359
      %p366 = scmp.eq.s32.totalorder %s26, 3
      %p367 = por %p365, %p366
      %p368 = scmp.ne.s32.totalorder %s360, %s363
      %p369 = scmp.eq.s32.totalorder %s26, 0
      %p370 = por %p368, %p369
      %p371 = scmp.ne.s32.totalorder %s360, %s363
      %p372 = scmp.eq.s32.totalorder %s31, 3
      %p373 = por %p371, %p372
      %p374 = scmp.ne.s32.totalorder %s363, %s364
      %p375 = scmp.eq.s32.totalorder %s31, 0
      %p376 = por %p374, %p375
      %p377 = scmp.ne.s32.totalorder %s363, %s364
      %p378 = scmp.eq.s32.totalorder %s32, 3
      %p379 = por %p377, %p378
      %p381 = scmp.ne.s32.totalorder %s364, %s380
      %p382 = scmp.eq.s32.totalorder %s32, 0
      %p383 = por %p381, %p382
      %s385 = sadd.s32 %s384, 1
      %p388 = scmp.eq.s32.totalorder %s26, 3
      %p389 = scmp.ne.s32.totalorder %s384, %s386
      %p390 = scmp.eq.s32.totalorder %s26, 0
      %p391 = por %p389, %p390
      %p392 = scmp.ne.s32.totalorder %s384, %s386
      %p393 = scmp.eq.s32.totalorder %s31, 3
      %p394 = por %p392, %p393
      %p395 = scmp.ne.s32.totalorder %s386, %s387
      %p396 = scmp.eq.s32.totalorder %s31, 0
      %p397 = por %p395, %p396
      %p398 = scmp.ne.s32.totalorder %s386, %s387
      %p399 = scmp.eq.s32.totalorder %s32, 3
      %p400 = por %p398, %p399
      %p402 = scmp.ne.s32.totalorder %s387, %s401
      %p403 = scmp.eq.s32.totalorder %s32, 0
      %p404 = por %p402, %p403
      %s406 = sadd.s32 %s405, 1
      %p409 = scmp.eq.s32.totalorder %s26, 3
      %p410 = scmp.ne.s32.totalorder %s405, %s407
      %p411 = scmp.eq.s32.totalorder %s26, 0
      %p412 = por %p410, %p411
      %p413 = scmp.ne.s32.totalorder %s405, %s407
      %p414 = scmp.eq.s32.totalorder %s31, 3
      %p415 = por %p413, %p414
      %p416 = scmp.ne.s32.totalorder %s407, %s408
      %p417 = scmp.eq.s32.totalorder %s31, 0
      %p418 = por %p416, %p417
      %p419 = scmp.ne.s32.totalorder %s407, %s408
      %p420 = scmp.eq.s32.totalorder %s32, 3
      %p421 = por %p419, %p420
      %p423 = scmp.ne.s32.totalorder %s408, %s422
      %p424 = scmp.eq.s32.totalorder %s32, 0
      %p425 = por %p423, %p424
      %s427 = sadd.s32 %s426, 1
      %p430 = scmp.eq.s32.totalorder %s26, 3
      %p431 = scmp.ne.s32.totalorder %s426, %s428
      %p432 = scmp.eq.s32.totalorder %s26, 0
      %p433 = por %p431, %p432
      %p434 = scmp.ne.s32.totalorder %s426, %s428
      %p435 = scmp.eq.s32.totalorder %s31, 3
      %p436 = por %p434, %p435
      %p437 = scmp.ne.s32.totalorder %s428, %s429
      %p438 = scmp.eq.s32.totalorder %s31, 0
      %p439 = por %p437, %p438
      %p440 = scmp.ne.s32.totalorder %s428, %s429
      %p441 = scmp.eq.s32.totalorder %s32, 3
      %p442 = por %p440, %p441
      %p444 = scmp.ne.s32.totalorder %s429, %s443
      %p445 = scmp.eq.s32.totalorder %s32, 0
      %p446 = por %p444, %p445
      %s448 = sadd.s32 %s447, 1
      %p451 = scmp.eq.s32.totalorder %s26, 3
      %p452 = scmp.ne.s32.totalorder %s447, %s449
      %p453 = scmp.eq.s32.totalorder %s26, 0
      %p454 = por %p452, %p453
      %p455 = scmp.ne.s32.totalorder %s447, %s449
      %p456 = scmp.eq.s32.totalorder %s31, 3
      %p457 = por %p455, %p456
      %p458 = scmp.ne.s32.totalorder %s449, %s450
      %p459 = scmp.eq.s32.totalorder %s31, 0
      %p460 = por %p458, %p459
      %p461 = scmp.ne.s32.totalorder %s449, %s450
      %p462 = scmp.eq.s32.totalorder %s32, 3
      %p463 = por %p461, %p462
      %p465 = scmp.ne.s32.totalorder %s450, %s464
      %p466 = scmp.eq.s32.totalorder %s32, 0
      %p467 = por %p465, %p466
      %s468 = ssub.s32 %s33, %s45
      %p469 = scmp.eq.s32.totalorder %s468, 0
      %s471 = sadd.s32 %s470, 1
      %s472 = scalar_select %p469, %s470, %s471
      %p475 = pneg %p469
      %p476 = scmp.eq.s32.totalorder %s26, 3
      %p477 = por %p475, %p476
      %p478 = scmp.ne.s32.totalorder %s470, %s473
      %p479 = scmp.eq.s32.totalorder %s26, 0
      %p480 = por %p478, %p479
      %p481 = scmp.ne.s32.totalorder %s470, %s473
      %p482 = scmp.eq.s32.totalorder %s31, 3
      %p483 = por %p481, %p482
      %p484 = scmp.ne.s32.totalorder %s473, %s474
      %p485 = scmp.eq.s32.totalorder %s31, 0
      %p486 = por %p484, %p485
      %p487 = scmp.ne.s32.totalorder %s473, %s474
      %p488 = scmp.eq.s32.totalorder %s32, 3
      %p489 = por %p487, %p488
      %p491 = scmp.ne.s32.totalorder %s474, %s490
      %p492 = scmp.eq.s32.totalorder %s32, 0
      %p493 = por %p491, %p492
      %p494 = scmp.le.s32.totalorder 1, %s26
      %p495 = scmp.lt.s32.totalorder %s26, 5
      %p496 = pnand %p494, %p495
      %p497 = pneg %p496
      // Predicated region
      $region9: #{tpu_custom_call.1} parent=5 // pred_check
        _
      $region10: #{tpu_custom_call.1} parent=5 // pred_check_branch
        %499 = sbr.rel (%p496) target = $region12
      $region11: #{tpu_custom_call.1} parent=5 // pred_region
        %s500 = ssub.s32 %s26, 1
        // Predicated region
        $region13: #{tpu_custom_call.1} parent=11 // pred_check
          %p501 = pneg %p397
        $region14: #{tpu_custom_call.1} parent=11 // pred_check_branch
          %503 = sbr.rel (%p501) target = $region16
        $region15: #{tpu_custom_call.1} parent=11 // pred_region
          _
        $region16: #{tpu_custom_call.1} parent=11 // pred_fallthru
          _
        // Predicated region
        $region17: #{tpu_custom_call.1} parent=11 // pred_check
          %p504 = pneg %p418
        $region18: #{tpu_custom_call.1} parent=11 // pred_check_branch
          %506 = sbr.rel (%p504) target = $region20
        $region19: #{tpu_custom_call.1} parent=11 // pred_region
          _
        $region20: #{tpu_custom_call.1} parent=11 // pred_fallthru
          _
        // Predicated region
        $region21: #{tpu_custom_call.1} parent=11 // pred_check
          %p507 = pneg %p439
        $region22: #{tpu_custom_call.1} parent=11 // pred_check_branch
          %509 = sbr.rel (%p507) target = $region24
        $region23: #{tpu_custom_call.1} parent=11 // pred_region
          _
        $region24: #{tpu_custom_call.1} parent=11 // pred_fallthru
          _
        // Predicated region
        $region25: #{tpu_custom_call.1} parent=11 // pred_check
          %p510 = pneg %p460
        $region26: #{tpu_custom_call.1} parent=11 // pred_check_branch
          %512 = sbr.rel (%p510) target = $region28
        $region27: #{tpu_custom_call.1} parent=11 // pred_region
          _
        $region28: #{tpu_custom_call.1} parent=11 // pred_fallthru
          _
      $region12: #{tpu_custom_call.1} parent=5 // pred_fallthru
        _
      %p513 = scmp.lt.s32.totalorder %s26, 4
      // Predicated region
      $region29: #{tpu_custom_call.1} parent=5 // pred_check
        %p514 = pneg %p513
      $region30: #{tpu_custom_call.1} parent=5 // pred_check_branch
        %516 = sbr.rel (%p514) target = $region32
      $region31: #{tpu_custom_call.1} parent=5 // pred_region
        // Predicated region
        $region33: #{tpu_custom_call.1} parent=31 // pred_check
          %p517 = pneg %p58
        $region34: #{tpu_custom_call.1} parent=31 // pred_check_branch
          %519 = sbr.rel (%p517) target = $region36
        $region35: #{tpu_custom_call.1} parent=31 // pred_region
          %p520 = scmp.lt.s32.totalorder %s33, 1
          %s521 = scalar_select %p520, %s33, 1
          %s522 = smul.addr %s521, 8
          %s523 = scalar_lea.vmem %s0, %s522
        $region36: #{tpu_custom_call.1} parent=31 // pred_fallthru
          _
        // Predicated region
        $region37: #{tpu_custom_call.1} parent=31 // pred_check
          %p524 = pneg %p84
        $region38: #{tpu_custom_call.1} parent=31 // pred_check_branch
          %526 = sbr.rel (%p524) target = $region40
        $region39: #{tpu_custom_call.1} parent=31 // pred_region
          %p527 = scmp.lt.s32.totalorder %s34, 1
          %s528 = scalar_select %p527, %s34, 1
          %s529 = scalar_lea.vmem %s1, %s528
        $region40: #{tpu_custom_call.1} parent=31 // pred_fallthru
          _
        // Predicated region
        $region41: #{tpu_custom_call.1} parent=31 // pred_check
          %p530 = pneg %p110
        $region42: #{tpu_custom_call.1} parent=31 // pred_check_branch
          %532 = sbr.rel (%p530) target = $region44
        $region43: #{tpu_custom_call.1} parent=31 // pred_region
          %p533 = scmp.lt.s32.totalorder %s34, 1
          %s534 = scalar_select %p533, %s34, 1
          %s535 = scalar_lea.vmem %s2, %s534
        $region44: #{tpu_custom_call.1} parent=31 // pred_fallthru
          _
        // Predicated region
        $region45: #{tpu_custom_call.1} parent=31 // pred_check
          %p536 = pneg %p136
        $region46: #{tpu_custom_call.1} parent=31 // pred_check_branch
          %538 = sbr.rel (%p536) target = $region48
        $region47: #{tpu_custom_call.1} parent=31 // pred_region
          %p539 = scmp.lt.s32.totalorder %s34, 1
          %s540 = scalar_select %p539, %s34, 1
          %s541 = smul.addr %s540, 4
          %s542 = smul.addr %s541, 4
          %s543 = scalar_lea.vmem %s3, %s542
        $region48: #{tpu_custom_call.1} parent=31 // pred_fallthru
          _
        // Predicated region
        $region49: #{tpu_custom_call.1} parent=31 // pred_check
          %p544 = pneg %p162
        $region50: #{tpu_custom_call.1} parent=31 // pred_check_branch
          %546 = sbr.rel (%p544) target = $region52
        $region51: #{tpu_custom_call.1} parent=31 // pred_region
          %p547 = scmp.lt.s32.totalorder %s34, 1
          %s548 = scalar_select %p547, %s34, 1
          %s549 = scalar_lea.vmem %s4, %s548
        $region52: #{tpu_custom_call.1} parent=31 // pred_fallthru
          _
        // Predicated region
        $region53: #{tpu_custom_call.1} parent=31 // pred_check
          %p550 = pneg %p188
        $region54: #{tpu_custom_call.1} parent=31 // pred_check_branch
          %552 = sbr.rel (%p550) target = $region56
        $region55: #{tpu_custom_call.1} parent=31 // pred_region
          %p553 = scmp.lt.s32.totalorder %s34, 1
          %s554 = scalar_select %p553, %s34, 1
          %s555 = smul.addr %s554, 4
          %s556 = smul.addr %s555, 4
          %s557 = scalar_lea.vmem %s5, %s556
        $region56: #{tpu_custom_call.1} parent=31 // pred_fallthru
          _
        // Predicated region
        $region57: #{tpu_custom_call.1} parent=31 // pred_check
          %p558 = pneg %p214
        $region58: #{tpu_custom_call.1} parent=31 // pred_check_branch
          %560 = sbr.rel (%p558) target = $region60
        $region59: #{tpu_custom_call.1} parent=31 // pred_region
          %p561 = scmp.lt.s32.totalorder %s34, 1
          %s562 = scalar_select %p561, %s34, 1
          %s563 = scalar_lea.vmem %s6, %s562
        $region60: #{tpu_custom_call.1} parent=31 // pred_fallthru
          _
        // Predicated region
        $region61: #{tpu_custom_call.1} parent=31 // pred_check
          %p564 = pneg %p240
        $region62: #{tpu_custom_call.1} parent=31 // pred_check_branch
          %566 = sbr.rel (%p564) target = $region64
        $region63: #{tpu_custom_call.1} parent=31 // pred_region
          %p567 = scmp.lt.s32.totalorder %s34, 1
          %s568 = scalar_select %p567, %s34, 1
          %s569 = scalar_lea.vmem %s7, %s568
        $region64: #{tpu_custom_call.1} parent=31 // pred_fallthru
          _
        // Predicated region
        $region65: #{tpu_custom_call.1} parent=31 // pred_check
          %p570 = pneg %p266
        $region66: #{tpu_custom_call.1} parent=31 // pred_check_branch
          %572 = sbr.rel (%p570) target = $region68
        $region67: #{tpu_custom_call.1} parent=31 // pred_region
          %p573 = scmp.lt.s32.totalorder %s34, 1
          %s574 = scalar_select %p573, %s34, 1
          %s575 = scalar_lea.vmem %s8, %s574
        $region68: #{tpu_custom_call.1} parent=31 // pred_fallthru
          _
        // Predicated region
        $region69: #{tpu_custom_call.1} parent=31 // pred_check
          %p576 = pneg %p292
        $region70: #{tpu_custom_call.1} parent=31 // pred_check_branch
          %578 = sbr.rel (%p576) target = $region72
        $region71: #{tpu_custom_call.1} parent=31 // pred_region
          %p579 = scmp.lt.s32.totalorder %s34, 1
          %s580 = scalar_select %p579, %s34, 1
          %s581 = smul.addr %s580, 4
          %s582 = smul.addr %s581, 4
          %s583 = scalar_lea.vmem %s9, %s582
        $region72: #{tpu_custom_call.1} parent=31 // pred_fallthru
          _
        // Predicated region
        $region73: #{tpu_custom_call.1} parent=31 // pred_check
          %p584 = pneg %p318
        $region74: #{tpu_custom_call.1} parent=31 // pred_check_branch
          %586 = sbr.rel (%p584) target = $region76
        $region75: #{tpu_custom_call.1} parent=31 // pred_region
          %p587 = scmp.lt.s32.totalorder %s34, 1
          %s588 = scalar_select %p587, %s34, 1
          %s589 = scalar_lea.vmem %s10, %s588
        $region76: #{tpu_custom_call.1} parent=31 // pred_fallthru
          _
        // Predicated region
        $region77: #{tpu_custom_call.1} parent=31 // pred_check
          %p590 = pneg %p344
        $region78: #{tpu_custom_call.1} parent=31 // pred_check_branch
          %592 = sbr.rel (%p590) target = $region80
        $region79: #{tpu_custom_call.1} parent=31 // pred_region
          %p593 = scmp.lt.s32.totalorder %s34, 1
          %s594 = scalar_select %p593, %s34, 1
          %s595 = smul.addr %s594, 16
          %s596 = smul.addr %s595, 4
          %s597 = scalar_lea.vmem %s11, %s596
        $region80: #{tpu_custom_call.1} parent=31 // pred_fallthru
          _
        // Predicated region
        $region81: #{tpu_custom_call.1} parent=31 // pred_check
          %p598 = pneg %p370
        $region82: #{tpu_custom_call.1} parent=31 // pred_check_branch
          %600 = sbr.rel (%p598) target = $region84
        $region83: #{tpu_custom_call.1} parent=31 // pred_region
          %p601 = scmp.lt.s32.totalorder %s34, 1
          %s602 = scalar_select %p601, %s34, 1
          %s603 = scalar_lea.vmem %s12, %s602
        $region84: #{tpu_custom_call.1} parent=31 // pred_fallthru
          _
      $region32: #{tpu_custom_call.1} parent=5 // pred_fallthru
        _
      %p604 = scmp.le.s32.totalorder 1, %s26
      %p605 = scmp.lt.s32.totalorder %s26, 5
      %p606 = pnand %p604, %p605
      %p607 = pneg %p606
      // Predicated region
      $region85: #{tpu_custom_call.1} parent=5 // pred_check
        _
      $region86: #{tpu_custom_call.1} parent=5 // pred_check_branch
        %609 = sbr.rel (%p606) target = $region88
      $region87: #{tpu_custom_call.1} parent=5 // pred_region
        %s610 = ssub.s32 %s26, 1
        %p611 = scmp.lt.s32.totalorder %s35, 1
        %s612 = scalar_select %p611, %s35, 1
        %s613 = smul.addr %s612, 8
        %s614 = scalar_lea.vmem %s0, %s613
        %p615 = pneg %p64
        %p616 = pneg %p61
        %p617 = scmp.lt.s32.totalorder %s36, 1
        %s618 = scalar_select %p617, %s36, 1
        %s619 = scalar_lea.vmem %s1, %s618
        %p620 = pneg %p90
        %p621 = pneg %p87
        %p622 = scmp.lt.s32.totalorder %s36, 1
        %s623 = scalar_select %p622, %s36, 1
        %s624 = scalar_lea.vmem %s2, %s623
        %p625 = pneg %p116
        %p626 = pneg %p113
        %p627 = scmp.lt.s32.totalorder %s36, 1
        %s628 = scalar_select %p627, %s36, 1
        %s629 = smul.addr %s628, 4
        %s630 = smul.addr %s629, 4
        %s631 = scalar_lea.vmem %s3, %s630
        %p632 = pneg %p142
        %p633 = pneg %p139
        %p634 = scmp.lt.s32.totalorder %s36, 1
        %s635 = scalar_select %p634, %s36, 1
        %s636 = scalar_lea.vmem %s4, %s635
        %p637 = pneg %p168
        %p638 = pneg %p165
        %p639 = scmp.lt.s32.totalorder %s36, 1
        %s640 = scalar_select %p639, %s36, 1
        %s641 = smul.addr %s640, 4
        %s642 = smul.addr %s641, 4
        %s643 = scalar_lea.vmem %s5, %s642
        %p644 = pneg %p194
        %p645 = pneg %p191
        %p646 = scmp.lt.s32.totalorder %s36, 1
        %s647 = scalar_select %p646, %s36, 1
        %s648 = scalar_lea.vmem %s6, %s647
        %p649 = pneg %p220
        %p650 = pneg %p217
        %p651 = scmp.lt.s32.totalorder %s36, 1
        %s652 = scalar_select %p651, %s36, 1
        %s653 = scalar_lea.vmem %s7, %s652
        %p654 = pneg %p246
        %p655 = pneg %p243
        %p656 = scmp.lt.s32.totalorder %s36, 1
        %s657 = scalar_select %p656, %s36, 1
        %s658 = scalar_lea.vmem %s8, %s657
        %p659 = pneg %p272
        %p660 = pneg %p269
        %p661 = scmp.lt.s32.totalorder %s36, 1
        %s662 = scalar_select %p661, %s36, 1
        %s663 = smul.addr %s662, 4
        %s664 = smul.addr %s663, 4
        %s665 = scalar_lea.vmem %s9, %s664
        %p666 = pneg %p298
        %p667 = pneg %p295
        %p668 = scmp.lt.s32.totalorder %s36, 1
        %s669 = scalar_select %p668, %s36, 1
        %s670 = scalar_lea.vmem %s10, %s669
        %p671 = pneg %p324
        %p672 = pneg %p321
        %p673 = scmp.lt.s32.totalorder %s36, 1
        %s674 = scalar_select %p673, %s36, 1
        %s675 = smul.addr %s674, 16
        %s676 = smul.addr %s675, 4
        %s677 = scalar_lea.vmem %s11, %s676
        %p678 = pneg %p350
        %p679 = pneg %p347
        %p680 = scmp.lt.s32.totalorder %s36, 1
        %s681 = scalar_select %p680, %s36, 1
        %s682 = scalar_lea.vmem %s12, %s681
        %p683 = pneg %p376
        %p684 = pneg %p373
        %p685 = pneg %p397
        %p686 = pneg %p394
        %p687 = pneg %p418
        %p688 = pneg %p415
        %p689 = pneg %p439
        %p690 = pneg %p436
        %p691 = pneg %p460
        %p692 = pneg %p457
        %p693 = pneg %p486
        %p694 = pneg %p483
        %s695 = sand.u32 %s473, 1
        %s696 = scalar_lea.sflag [#allocation5], %s695
        %s697 = sand.u32 %s473, 1
        %s698 = smul.addr %s697, 8
        %s699 = scalar_lea.vmem [#allocation4], %s698
        %p700 = scmp.lt.s32.totalorder %s35, 1
        %s701 = scalar_select %p700, %s35, 1
        %s702 = smul.addr %s701, 8
        %s703 = scalar_lea.vmem %s0, %s702
        %p704 = scmp.lt.s32.totalorder %s36, 1
        %s705 = scalar_select %p704, %s36, 1
        %s706 = scalar_lea.vmem %s1, %s705
        %p707 = scmp.lt.s32.totalorder %s36, 1
        %s708 = scalar_select %p707, %s36, 1
        %s709 = scalar_lea.vmem %s2, %s708
        %p710 = scmp.lt.s32.totalorder %s36, 1
        %s711 = scalar_select %p710, %s36, 1
        %s712 = smul.addr %s711, 4
        %s713 = smul.addr %s712, 4
        %s714 = scalar_lea.vmem %s3, %s713
        %p715 = scmp.lt.s32.totalorder %s36, 1
        %s716 = scalar_select %p715, %s36, 1
        %s717 = scalar_lea.vmem %s4, %s716
        %p718 = scmp.lt.s32.totalorder %s36, 1
        %s719 = scalar_select %p718, %s36, 1
        %s720 = smul.addr %s719, 4
        %s721 = smul.addr %s720, 4
        %s722 = scalar_lea.vmem %s5, %s721
        %p723 = scmp.lt.s32.totalorder %s36, 1
        %s724 = scalar_select %p723, %s36, 1
        %s725 = scalar_lea.vmem %s6, %s724
        %p726 = scmp.lt.s32.totalorder %s36, 1
        %s727 = scalar_select %p726, %s36, 1
        %s728 = scalar_lea.vmem %s7, %s727
        %p729 = scmp.lt.s32.totalorder %s36, 1
        %s730 = scalar_select %p729, %s36, 1
        %s731 = scalar_lea.vmem %s8, %s730
        %p732 = scmp.lt.s32.totalorder %s36, 1
        %s733 = scalar_select %p732, %s36, 1
        %s734 = smul.addr %s733, 4
        %s735 = smul.addr %s734, 4
        %s736 = scalar_lea.vmem %s9, %s735
        %p737 = scmp.lt.s32.totalorder %s36, 1
        %s738 = scalar_select %p737, %s36, 1
        %s739 = scalar_lea.vmem %s10, %s738
        %p740 = scmp.lt.s32.totalorder %s36, 1
        %s741 = scalar_select %p740, %s36, 1
        %s742 = smul.addr %s741, 16
        %s743 = smul.addr %s742, 4
        %s744 = scalar_lea.vmem %s11, %s743
        %p745 = scmp.lt.s32.totalorder %s36, 1
        %s746 = scalar_select %p745, %s36, 1
        %s747 = scalar_lea.vmem %s12, %s746
        %p749 = scmp.eq.s32.totalorder %s36, 0
        // Predicated region
        $region89: #{tpu_custom_call.1} parent=87 // pred_check
          %p750 = pneg %p749
        $region90: #{tpu_custom_call.1} parent=87 // pred_check_branch
          %752 = sbr.rel (%p750) target = $region92
        $region91: #{tpu_custom_call.1} parent=87 // pred_region
          %v753 = vld [vmem:[%s703] sm:$0xff]
          %vm754 = vcmask 261120
          %755 = vst.msk [vmem:[#allocation2] sm:$0xff] %vm754, %v753
        $region92: #{tpu_custom_call.1} parent=87 // pred_fallthru
          _
        %v756 = vld [vmem:[#allocation2] sm:$0xff]
        %v757 = vld [vmem:[%s706] sm:$0x1]
        %v758 = vld [vmem:[%s709] sm:$0x1]
        %vm759 = vcmask 261120
        %v760 = vsel %vm759, %v756, 0.0
        %761 = vadd.xlane.f32.xlu0 %v760
        %v762 = vpop.xlane.xlu0 %761
        %v763 = vrcp.pop 32.0
        %v764 = vmul.f32 %v762, %v763
        %v765 = vsub.f32 %v756, %v764
        %v766 = vmul.f32 %v765, %v765
        %v767 = vsel %vm759, %v766, 0.0
        %768 = vadd.xlane.f32.xlu0 %v767
        %v769 = vpop.xlane.xlu0 %768
        %v770 = vmul.f32 %v769, %v763
        %v771 = vadd.f32 %v770, 1e-05
        %v772 = vrsqrt.pop %v771
        %v773 = vmul.f32 %v765, %v772
        %v775 = vlaneseq
        %v776 = vshrl.u32 %v775, 7
        %v777 = vsub.s32 0, %v776
        %v778 = vrot.slane %v757, %v777
        %v780 = vmul.f32 %v773, %v778
        %v782 = vlaneseq
        %v783 = vshrl.u32 %v782, 7
        %v784 = vsub.s32 0, %v783
        %v785 = vrot.slane %v758, %v784
        %v787 = vadd.f32 %v780, %v785
        %v788 = vpack.c.bf16 %v787, %v787
        %v789 = vld [vmem:[%s714] sm:$0xf]
        %v790 = vld [vmem:[%s714 + $0x4] sm:$0xf]
        %v791 = vld [vmem:[%s714 + $0x8] sm:$0xf]
        %v792 = vld [vmem:[%s714 + $0xc] sm:$0xf]
        %v793 = vld [vmem:[%s717] sm:$0x1]
        %v795 = vlaneseq
        %v796 = vshrl.u32 %v795, 7
        %v797 = vsub.s32 0, %v796
        %v798 = vrot.slane %v793, %v797
        %v804 = vunpack.c.l.b16 %v789
        %v805 = vunpack.c.l.b16 %v790
        %v806 = vunpack.c.l.b16 %v791
        %v807 = vunpack.c.l.b16 %v792
        %v808 = vpack.c.b16 %v805, %v804
        %v809 = vpack.c.b16 %v807, %v806
        %v813 = vsel %vm759, %v788, 0
        %815 = vmatprep.subr.bf16.mxu0 0
        %816 = vmatpush1.bf16.msra.mxu0 0
        %817 = vmatprep.subr.bf16.mxu0 0
        %818 = vmatpush1.bf16.msra.mxu0 0
        %819 = vmatprep.subr.bf16.mxu0 0
        %820 = vmatpush1.bf16.msra.mxu0 0
        %821 = vmatprep.subr.bf16.mxu0 0
        %822 = vmatpush1.bf16.msra.mxu0 0
        %823 = vmatprep.subr.bf16.mxu0 0
        %824 = vmatpush1.bf16.msra.mxu0 0
        %825 = vmatprep.subr.bf16.mxu0 0
        %826 = vmatpush1.bf16.msra.mxu0 0
        %827 = vmatprep.subr.bf16.mxu0 0
        %828 = vmatpush1.bf16.msra.mxu0 %v809
        %829 = vmatprep.subr.bf16.mxu0 0
        %830 = vmatpush1.bf16.msra.mxu0 %v808
        %831 = vmatprep.subr.bf16.mxu0 0
        %832 = vmatpush2.bf16.msra.mxu0 0
        %833 = vmatprep.subr.bf16.mxu0 0
        %834 = vmatpush2.bf16.msra.mxu0 0
        %835 = vmatprep.subr.bf16.mxu0 0
        %836 = vmatpush2.bf16.msra.mxu0 0
        %837 = vmatprep.subr.bf16.mxu0 0
        %838 = vmatpush2.bf16.msra.mxu0 0
        %839 = vmatprep.subr.bf16.mxu0 0
        %840 = vmatpush2.bf16.msra.mxu0 0
        %841 = vmatprep.subr.bf16.mxu0 0
        %842 = vmatpush2.bf16.msra.mxu0 0
        %843 = vmatprep.subr.bf16.mxu0 0
        %844 = vmatpush2.bf16.msra.mxu0 0
        %845 = vmatprep.subr.bf16.mxu0 0
        %846 = vmatpush2.bf16.msra.mxu0 0
        %847 = vmatprep.mubr.bf16.mxu0 0
        %848 = vmatmul.mubr.bf16.gmra.mxu0 %v813
        %v849 = vpop.f32.mrf.mxu0
        %v850 = vadd.f32 %v798, %v849
        %v851 = vpop.f32.mrf.mxu0
        %v852 = vpop.f32.mrf.mxu0
        %v853 = vpop.f32.mrf.mxu0
        %854 = vdwg.mxu0
        %v855 = vpack.c.bf16 %v850, %v850
        %857 = vrot.lane.b32.xlu0 %v855, 96
        %v858 = vpop.permute.xlu0 %857
        %vm859 = vcmask 64512
        %v861 = vsel %vm859, %v855, 0
        %v864 = vsel %vm859, %v858, 0
        %866 = vmatprep.subr.bf16.mxu0 0
        %867 = vmatpush1.bf16.xpose.msra.mxu0 0
        %868 = vmatprep.subr.bf16.mxu0 0
        %869 = vmatpush1.bf16.xpose.msra.mxu0 0
        %870 = vmatprep.subr.bf16.mxu0 0
        %871 = vmatpush1.bf16.xpose.msra.mxu0 0
        %872 = vmatprep.subr.bf16.mxu0 0
        %873 = vmatpush1.bf16.xpose.msra.mxu0 0
        %874 = vmatprep.subr.bf16.mxu0 0
        %875 = vmatpush1.bf16.xpose.msra.mxu0 0
        %876 = vmatprep.subr.bf16.mxu0 0
        %877 = vmatpush1.bf16.xpose.msra.mxu0 0
        %878 = vmatprep.subr.bf16.mxu0 0
        %879 = vmatpush1.bf16.xpose.msra.mxu0 0
        %880 = vmatprep.subr.bf16.mxu0 0
        %881 = vmatpush1.bf16.xpose.msra.mxu0 %v864
        %882 = vmatprep.subr.bf16.mxu0 0
        %883 = vmatpush2.bf16.xpose.msra.mxu0 0
        %884 = vmatprep.subr.bf16.mxu0 0
        %885 = vmatpush2.bf16.xpose.msra.mxu0 0
        %886 = vmatprep.subr.bf16.mxu0 0
        %887 = vmatpush2.bf16.xpose.msra.mxu0 0
        %888 = vmatprep.subr.bf16.mxu0 0
        %889 = vmatpush2.bf16.xpose.msra.mxu0 0
        %890 = vmatprep.subr.bf16.mxu0 0
        %891 = vmatpush2.bf16.xpose.msra.mxu0 0
        %892 = vmatprep.subr.bf16.mxu0 0
        %893 = vmatpush2.bf16.xpose.msra.mxu0 0
        %894 = vmatprep.subr.bf16.mxu0 0
        %895 = vmatpush2.bf16.xpose.msra.mxu0 0
        %896 = vmatprep.subr.bf16.mxu0 0
        %897 = vmatpush2.bf16.xpose.msra.mxu0 0
        %898 = vmatprep.mubr.bf16.mxu0 0
        %899 = vmatmul.mubr.bf16.gmra.mxu0 %v861
        %v900 = vpop.f32.mrf.mxu0
        %v901 = vadd.f32 0.0, %v900
        %v902 = vpop.f32.mrf.mxu0
        %v903 = vpop.f32.mrf.mxu0
        %v904 = vpop.f32.mrf.mxu0
        %905 = vdwg.mxu0
        %v906 = vsel %vm859, %v901, -inf
        %907 = vmax.xlane.f32.xlu0 %v906
        %v908 = vpop.xlane.xlu0 %907
        %v909 = vsub.f32 %v901, %v908
        %v910 = vmul.f32 %v909, 1.442695
        %v911 = vpow.pop %v910
        %v912 = vsel %vm859, %v911, 0.0
        %913 = vadd.xlane.f32.xlu0 %v912
        %v914 = vpop.xlane.xlu0 %913
        %v915 = vrcp.pop %v914
        %v916 = vmul.f32 %v911, %v915
        %v917 = vpack.c.bf16 %v916, %v916
        %918 = vrot.lane.b32.xlu0 %v855, 64
        %v919 = vpop.permute.xlu0 %918
        %v921 = vsel %vm859, %v917, 0
        %vm923 = vcmask 1043456
        %v925 = vsel %vm923, %v919, 0
        %927 = vmatprep.subr.bf16.mxu0 0
        %928 = vmatpush1.bf16.msra.mxu0 0
        %929 = vmatprep.subr.bf16.mxu0 0
        %930 = vmatpush1.bf16.msra.mxu0 0
        %931 = vmatprep.subr.bf16.mxu0 0
        %932 = vmatpush1.bf16.msra.mxu0 0
        %933 = vmatprep.subr.bf16.mxu0 0
        %934 = vmatpush1.bf16.msra.mxu0 0
        %935 = vmatprep.subr.bf16.mxu0 0
        %936 = vmatpush1.bf16.msra.mxu0 0
        %937 = vmatprep.subr.bf16.mxu0 0
        %938 = vmatpush1.bf16.msra.mxu0 0
        %939 = vmatprep.subr.bf16.mxu0 0
        %940 = vmatpush1.bf16.msra.mxu0 0
        %941 = vmatprep.subr.bf16.mxu0 0
        %942 = vmatpush1.bf16.msra.mxu0 %v925
        %943 = vmatprep.subr.bf16.mxu0 0
        %944 = vmatpush2.bf16.msra.mxu0 0
        %945 = vmatprep.subr.bf16.mxu0 0
        %946 = vmatpush2.bf16.msra.mxu0 0
        %947 = vmatprep.subr.bf16.mxu0 0
        %948 = vmatpush2.bf16.msra.mxu0 0
        %949 = vmatprep.subr.bf16.mxu0 0
        %950 = vmatpush2.bf16.msra.mxu0 0
        %951 = vmatprep.subr.bf16.mxu0 0
        %952 = vmatpush2.bf16.msra.mxu0 0
        %953 = vmatprep.subr.bf16.mxu0 0
        %954 = vmatpush2.bf16.msra.mxu0 0
        %955 = vmatprep.subr.bf16.mxu0 0
        %956 = vmatpush2.bf16.msra.mxu0 0
        %957 = vmatprep.subr.bf16.mxu0 0
        %958 = vmatpush2.bf16.msra.mxu0 0
        %959 = vmatprep.mubr.bf16.mxu0 0
        %960 = vmatmul.mubr.bf16.gmra.mxu0 %v921
        %v961 = vpop.f32.mrf.mxu0
        %v962 = vadd.f32 0.0, %v961
        %v963 = vpop.f32.mrf.mxu0
        %v964 = vpop.f32.mrf.mxu0
        %v965 = vpop.f32.mrf.mxu0
        %966 = vdwg.mxu0
        %967 = vst.msk [vmem:[#allocation3] sm:$0xff] %vm859, %v962
        %968 = vrot.lane.b32.xlu0 %v855, 120
        %v969 = vpop.permute.xlu0 %968
        %970 = vrot.lane.b32.xlu0 %v855, 88
        %v971 = vpop.permute.xlu0 %970
        %v973 = vsel %vm859, %v969, 0
        %v976 = vsel %vm859, %v971, 0
        %978 = vmatprep.subr.bf16.mxu0 0
        %979 = vmatpush1.bf16.xpose.msra.mxu0 0
        %980 = vmatprep.subr.bf16.mxu0 0
        %981 = vmatpush1.bf16.xpose.msra.mxu0 0
        %982 = vmatprep.subr.bf16.mxu0 0
        %983 = vmatpush1.bf16.xpose.msra.mxu0 0
        %984 = vmatprep.subr.bf16.mxu0 0
        %985 = vmatpush1.bf16.xpose.msra.mxu0 0
        %986 = vmatprep.subr.bf16.mxu0 0
        %987 = vmatpush1.bf16.xpose.msra.mxu0 0
        %988 = vmatprep.subr.bf16.mxu0 0
        %989 = vmatpush1.bf16.xpose.msra.mxu0 0
        %990 = vmatprep.subr.bf16.mxu0 0
        %991 = vmatpush1.bf16.xpose.msra.mxu0 0
        %992 = vmatprep.subr.bf16.mxu0 0
        %993 = vmatpush1.bf16.xpose.msra.mxu0 %v976
        %994 = vmatprep.subr.bf16.mxu0 0
        %995 = vmatpush2.bf16.xpose.msra.mxu0 0
        %996 = vmatprep.subr.bf16.mxu0 0
        %997 = vmatpush2.bf16.xpose.msra.mxu0 0
        %998 = vmatprep.subr.bf16.mxu0 0
        %999 = vmatpush2.bf16.xpose.msra.mxu0 0
        %1000 = vmatprep.subr.bf16.mxu0 0
        %1001 = vmatpush2.bf16.xpose.msra.mxu0 0
        %1002 = vmatprep.subr.bf16.mxu0 0
        %1003 = vmatpush2.bf16.xpose.msra.mxu0 0
        %1004 = vmatprep.subr.bf16.mxu0 0
        %1005 = vmatpush2.bf16.xpose.msra.mxu0 0
        %1006 = vmatprep.subr.bf16.mxu0 0
        %1007 = vmatpush2.bf16.xpose.msra.mxu0 0
        %1008 = vmatprep.subr.bf16.mxu0 0
        %1009 = vmatpush2.bf16.xpose.msra.mxu0 0
        %1010 = vmatprep.mubr.bf16.mxu0 0
        %1011 = vmatmul.mubr.bf16.gmra.mxu0 %v973
        %v1012 = vpop.f32.mrf.mxu0
        %v1013 = vadd.f32 0.0, %v1012
        %v1014 = vpop.f32.mrf.mxu0
        %v1015 = vpop.f32.mrf.mxu0
        %v1016 = vpop.f32.mrf.mxu0
        %1017 = vdwg.mxu0
        %v1018 = vsel %vm859, %v1013, -inf
        %1019 = vmax.xlane.f32.xlu0 %v1018
        %v1020 = vpop.xlane.xlu0 %1019
        %v1021 = vsub.f32 %v1013, %v1020
        %v1022 = vmul.f32 %v1021, 1.442695
        %v1023 = vpow.pop %v1022
        %v1024 = vsel %vm859, %v1023, 0.0
        %1025 = vadd.xlane.f32.xlu0 %v1024
        %v1026 = vpop.xlane.xlu0 %1025
        %v1027 = vrcp.pop %v1026
        %v1028 = vmul.f32 %v1023, %v1027
        %v1029 = vpack.c.bf16 %v1028, %v1028
        %1030 = vrot.lane.b32.xlu0 %v855, 56
        %v1031 = vpop.permute.xlu0 %1030
        %v1033 = vsel %vm859, %v1029, 0
        %v1036 = vsel %vm923, %v1031, 0
        %1038 = vmatprep.subr.bf16.mxu0 0
        %1039 = vmatpush1.bf16.msra.mxu0 0
        %1040 = vmatprep.subr.bf16.mxu0 0
        %1041 = vmatpush1.bf16.msra.mxu0 0
        %1042 = vmatprep.subr.bf16.mxu0 0
        %1043 = vmatpush1.bf16.msra.mxu0 0
        %1044 = vmatprep.subr.bf16.mxu0 0
        %1045 = vmatpush1.bf16.msra.mxu0 0
        %1046 = vmatprep.subr.bf16.mxu0 0
        %1047 = vmatpush1.bf16.msra.mxu0 0
        %1048 = vmatprep.subr.bf16.mxu0 0
        %1049 = vmatpush1.bf16.msra.mxu0 0
        %1050 = vmatprep.subr.bf16.mxu0 0
        %1051 = vmatpush1.bf16.msra.mxu0 0
        %1052 = vmatprep.subr.bf16.mxu0 0
        %1053 = vmatpush1.bf16.msra.mxu0 %v1036
        %1054 = vmatprep.subr.bf16.mxu0 0
        %1055 = vmatpush2.bf16.msra.mxu0 0
        %1056 = vmatprep.subr.bf16.mxu0 0
        %1057 = vmatpush2.bf16.msra.mxu0 0
        %1058 = vmatprep.subr.bf16.mxu0 0
        %1059 = vmatpush2.bf16.msra.mxu0 0
        %1060 = vmatprep.subr.bf16.mxu0 0
        %1061 = vmatpush2.bf16.msra.mxu0 0
        %1062 = vmatprep.subr.bf16.mxu0 0
        %1063 = vmatpush2.bf16.msra.mxu0 0
        %1064 = vmatprep.subr.bf16.mxu0 0
        %1065 = vmatpush2.bf16.msra.mxu0 0
        %1066 = vmatprep.subr.bf16.mxu0 0
        %1067 = vmatpush2.bf16.msra.mxu0 0
        %1068 = vmatprep.subr.bf16.mxu0 0
        %1069 = vmatpush2.bf16.msra.mxu0 0
        %1070 = vmatprep.mubr.bf16.mxu0 0
        %1071 = vmatmul.mubr.bf16.gmra.mxu0 %v1033
        %v1072 = vpop.f32.mrf.mxu0
        %v1073 = vadd.f32 0.0, %v1072
        %v1074 = vpop.f32.mrf.mxu0
        %v1075 = vpop.f32.mrf.mxu0
        %v1076 = vpop.f32.mrf.mxu0
        %1077 = vdwg.mxu0
        %1079 = vrot.lane.b32.xlu0 %v1073, 8
        %v1080 = vpop.permute.xlu0 %1079
        %vm1082 = vcmask 130112
        %1083 = vst.msk [vmem:[#allocation3] sm:$0xff] %vm1082, %v1080
        %1084 = vrot.lane.b32.xlu0 %v855, 112
        %v1085 = vpop.permute.xlu0 %1084
        %1086 = vrot.lane.b32.xlu0 %v855, 80
        %v1087 = vpop.permute.xlu0 %1086
        %v1089 = vsel %vm859, %v1085, 0
        %v1092 = vsel %vm859, %v1087, 0
        %1094 = vmatprep.subr.bf16.mxu0 0
        %1095 = vmatpush1.bf16.xpose.msra.mxu0 0
        %1096 = vmatprep.subr.bf16.mxu0 0
        %1097 = vmatpush1.bf16.xpose.msra.mxu0 0
        %1098 = vmatprep.subr.bf16.mxu0 0
        %1099 = vmatpush1.bf16.xpose.msra.mxu0 0
        %1100 = vmatprep.subr.bf16.mxu0 0
        %1101 = vmatpush1.bf16.xpose.msra.mxu0 0
        %1102 = vmatprep.subr.bf16.mxu0 0
        %1103 = vmatpush1.bf16.xpose.msra.mxu0 0
        %1104 = vmatprep.subr.bf16.mxu0 0
        %1105 = vmatpush1.bf16.xpose.msra.mxu0 0
        %1106 = vmatprep.subr.bf16.mxu0 0
        %1107 = vmatpush1.bf16.xpose.msra.mxu0 0
        %1108 = vmatprep.subr.bf16.mxu0 0
        %1109 = vmatpush1.bf16.xpose.msra.mxu0 %v1092
        %1110 = vmatprep.subr.bf16.mxu0 0
        %1111 = vmatpush2.bf16.xpose.msra.mxu0 0
        %1112 = vmatprep.subr.bf16.mxu0 0
        %1113 = vmatpush2.bf16.xpose.msra.mxu0 0
        %1114 = vmatprep.subr.bf16.mxu0 0
        %1115 = vmatpush2.bf16.xpose.msra.mxu0 0
        %1116 = vmatprep.subr.bf16.mxu0 0
        %1117 = vmatpush2.bf16.xpose.msra.mxu0 0
        %1118 = vmatprep.subr.bf16.mxu0 0
        %1119 = vmatpush2.bf16.xpose.msra.mxu0 0
        %1120 = vmatprep.subr.bf16.mxu0 0
        %1121 = vmatpush2.bf16.xpose.msra.mxu0 0
        %1122 = vmatprep.subr.bf16.mxu0 0
        %1123 = vmatpush2.bf16.xpose.msra.mxu0 0
        %1124 = vmatprep.subr.bf16.mxu0 0
        %1125 = vmatpush2.bf16.xpose.msra.mxu0 0
        %1126 = vmatprep.mubr.bf16.mxu0 0
        %1127 = vmatmul.mubr.bf16.gmra.mxu0 %v1089
        %v1128 = vpop.f32.mrf.mxu0
        %v1129 = vadd.f32 0.0, %v1128
        %v1130 = vpop.f32.mrf.mxu0
        %v1131 = vpop.f32.mrf.mxu0
        %v1132 = vpop.f32.mrf.mxu0
        %1133 = vdwg.mxu0
        %v1134 = vsel %vm859, %v1129, -inf
        %1135 = vmax.xlane.f32.xlu0 %v1134
        %v1136 = vpop.xlane.xlu0 %1135
        %v1137 = vsub.f32 %v1129, %v1136
        %v1138 = vmul.f32 %v1137, 1.442695
        %v1139 = vpow.pop %v1138
        %v1140 = vsel %vm859, %v1139, 0.0
        %1141 = vadd.xlane.f32.xlu0 %v1140
        %v1142 = vpop.xlane.xlu0 %1141
        %v1143 = vrcp.pop %v1142
        %v1144 = vmul.f32 %v1139, %v1143
        %v1145 = vpack.c.bf16 %v1144, %v1144
        %1146 = vrot.lane.b32.xlu0 %v855, 48
        %v1147 = vpop.permute.xlu0 %1146
        %v1149 = vsel %vm859, %v1145, 0
        %v1152 = vsel %vm923, %v1147, 0
        %1154 = vmatprep.subr.bf16.mxu0 0
        %1155 = vmatpush1.bf16.msra.mxu0 0
        %1156 = vmatprep.subr.bf16.mxu0 0
        %1157 = vmatpush1.bf16.msra.mxu0 0
        %1158 = vmatprep.subr.bf16.mxu0 0
        %1159 = vmatpush1.bf16.msra.mxu0 0
        %1160 = vmatprep.subr.bf16.mxu0 0
        %1161 = vmatpush1.bf16.msra.mxu0 0
        %1162 = vmatprep.subr.bf16.mxu0 0
        %1163 = vmatpush1.bf16.msra.mxu0 0
        %1164 = vmatprep.subr.bf16.mxu0 0
        %1165 = vmatpush1.bf16.msra.mxu0 0
        %1166 = vmatprep.subr.bf16.mxu0 0
        %1167 = vmatpush1.bf16.msra.mxu0 0
        %1168 = vmatprep.subr.bf16.mxu0 0
        %1169 = vmatpush1.bf16.msra.mxu0 %v1152
        %1170 = vmatprep.subr.bf16.mxu0 0
        %1171 = vmatpush2.bf16.msra.mxu0 0
        %1172 = vmatprep.subr.bf16.mxu0 0
        %1173 = vmatpush2.bf16.msra.mxu0 0
        %1174 = vmatprep.subr.bf16.mxu0 0
        %1175 = vmatpush2.bf16.msra.mxu0 0
        %1176 = vmatprep.subr.bf16.mxu0 0
        %1177 = vmatpush2.bf16.msra.mxu0 0
        %1178 = vmatprep.subr.bf16.mxu0 0
        %1179 = vmatpush2.bf16.msra.mxu0 0
        %1180 = vmatprep.subr.bf16.mxu0 0
        %1181 = vmatpush2.bf16.msra.mxu0 0
        %1182 = vmatprep.subr.bf16.mxu0 0
        %1183 = vmatpush2.bf16.msra.mxu0 0
        %1184 = vmatprep.subr.bf16.mxu0 0
        %1185 = vmatpush2.bf16.msra.mxu0 0
        %1186 = vmatprep.mubr.bf16.mxu0 0
        %1187 = vmatmul.mubr.bf16.gmra.mxu0 %v1149
        %v1188 = vpop.f32.mrf.mxu0
        %v1189 = vadd.f32 0.0, %v1188
        %v1190 = vpop.f32.mrf.mxu0
        %v1191 = vpop.f32.mrf.mxu0
        %v1192 = vpop.f32.mrf.mxu0
        %1193 = vdwg.mxu0
        %1195 = vrot.lane.b32.xlu0 %v1189, 16
        %v1196 = vpop.permute.xlu0 %1195
        %vm1198 = vcmask 195712
        %1199 = vst.msk [vmem:[#allocation3] sm:$0xff] %vm1198, %v1196
        %1200 = vrot.lane.b32.xlu0 %v855, 104
        %v1201 = vpop.permute.xlu0 %1200
        %1202 = vrot.lane.b32.xlu0 %v855, 72
        %v1203 = vpop.permute.xlu0 %1202
        %v1205 = vsel %vm859, %v1201, 0
        %v1208 = vsel %vm859, %v1203, 0
        %1210 = vmatprep.subr.bf16.mxu0 0
        %1211 = vmatpush1.bf16.xpose.msra.mxu0 0
        %1212 = vmatprep.subr.bf16.mxu0 0
        %1213 = vmatpush1.bf16.xpose.msra.mxu0 0
        %1214 = vmatprep.subr.bf16.mxu0 0
        %1215 = vmatpush1.bf16.xpose.msra.mxu0 0
        %1216 = vmatprep.subr.bf16.mxu0 0
        %1217 = vmatpush1.bf16.xpose.msra.mxu0 0
        %1218 = vmatprep.subr.bf16.mxu0 0
        %1219 = vmatpush1.bf16.xpose.msra.mxu0 0
        %1220 = vmatprep.subr.bf16.mxu0 0
        %1221 = vmatpush1.bf16.xpose.msra.mxu0 0
        %1222 = vmatprep.subr.bf16.mxu0 0
        %1223 = vmatpush1.bf16.xpose.msra.mxu0 0
        %1224 = vmatprep.subr.bf16.mxu0 0
        %1225 = vmatpush1.bf16.xpose.msra.mxu0 %v1208
        %1226 = vmatprep.subr.bf16.mxu0 0
        %1227 = vmatpush2.bf16.xpose.msra.mxu0 0
        %1228 = vmatprep.subr.bf16.mxu0 0
        %1229 = vmatpush2.bf16.xpose.msra.mxu0 0
        %1230 = vmatprep.subr.bf16.mxu0 0
        %1231 = vmatpush2.bf16.xpose.msra.mxu0 0
        %1232 = vmatprep.subr.bf16.mxu0 0
        %1233 = vmatpush2.bf16.xpose.msra.mxu0 0
        %1234 = vmatprep.subr.bf16.mxu0 0
        %1235 = vmatpush2.bf16.xpose.msra.mxu0 0
        %1236 = vmatprep.subr.bf16.mxu0 0
        %1237 = vmatpush2.bf16.xpose.msra.mxu0 0
        %1238 = vmatprep.subr.bf16.mxu0 0
        %1239 = vmatpush2.bf16.xpose.msra.mxu0 0
        %1240 = vmatprep.subr.bf16.mxu0 0
        %1241 = vmatpush2.bf16.xpose.msra.mxu0 0
        %1242 = vmatprep.mubr.bf16.mxu0 0
        %1243 = vmatmul.mubr.bf16.gmra.mxu0 %v1205
        %v1244 = vpop.f32.mrf.mxu0
        %v1245 = vadd.f32 0.0, %v1244
        %v1246 = vpop.f32.mrf.mxu0
        %v1247 = vpop.f32.mrf.mxu0
        %v1248 = vpop.f32.mrf.mxu0
        %1249 = vdwg.mxu0
        %v1250 = vsel %vm859, %v1245, -inf
        %1251 = vmax.xlane.f32.xlu0 %v1250
        %v1252 = vpop.xlane.xlu0 %1251
        %v1253 = vsub.f32 %v1245, %v1252
        %v1254 = vmul.f32 %v1253, 1.442695
        %v1255 = vpow.pop %v1254
        %v1256 = vsel %vm859, %v1255, 0.0
        %1257 = vadd.xlane.f32.xlu0 %v1256
        %v1258 = vpop.xlane.xlu0 %1257
        %v1259 = vrcp.pop %v1258
        %v1260 = vmul.f32 %v1255, %v1259
        %v1261 = vpack.c.bf16 %v1260, %v1260
        %1262 = vrot.lane.b32.xlu0 %v855, 40
        %v1263 = vpop.permute.xlu0 %1262
        %v1265 = vsel %vm859, %v1261, 0
        %v1268 = vsel %vm923, %v1263, 0
        %1270 = vmatprep.subr.bf16.mxu0 0
        %1271 = vmatpush1.bf16.msra.mxu0 0
        %1272 = vmatprep.subr.bf16.mxu0 0
        %1273 = vmatpush1.bf16.msra.mxu0 0
        %1274 = vmatprep.subr.bf16.mxu0 0
        %1275 = vmatpush1.bf16.msra.mxu0 0
        %1276 = vmatprep.subr.bf16.mxu0 0
        %1277 = vmatpush1.bf16.msra.mxu0 0
        %1278 = vmatprep.subr.bf16.mxu0 0
        %1279 = vmatpush1.bf16.msra.mxu0 0
        %1280 = vmatprep.subr.bf16.mxu0 0
        %1281 = vmatpush1.bf16.msra.mxu0 0
        %1282 = vmatprep.subr.bf16.mxu0 0
        %1283 = vmatpush1.bf16.msra.mxu0 0
        %1284 = vmatprep.subr.bf16.mxu0 0
        %1285 = vmatpush1.bf16.msra.mxu0 %v1268
        %1286 = vmatprep.subr.bf16.mxu0 0
        %1287 = vmatpush2.bf16.msra.mxu0 0
        %1288 = vmatprep.subr.bf16.mxu0 0
        %1289 = vmatpush2.bf16.msra.mxu0 0
        %1290 = vmatprep.subr.bf16.mxu0 0
        %1291 = vmatpush2.bf16.msra.mxu0 0
        %1292 = vmatprep.subr.bf16.mxu0 0
        %1293 = vmatpush2.bf16.msra.mxu0 0
        %1294 = vmatprep.subr.bf16.mxu0 0
        %1295 = vmatpush2.bf16.msra.mxu0 0
        %1296 = vmatprep.subr.bf16.mxu0 0
        %1297 = vmatpush2.bf16.msra.mxu0 0
        %1298 = vmatprep.subr.bf16.mxu0 0
        %1299 = vmatpush2.bf16.msra.mxu0 0
        %1300 = vmatprep.subr.bf16.mxu0 0
        %1301 = vmatpush2.bf16.msra.mxu0 0
        %1302 = vmatprep.mubr.bf16.mxu0 0
        %1303 = vmatmul.mubr.bf16.gmra.mxu0 %v1265
        %v1304 = vpop.f32.mrf.mxu0
        %v1305 = vadd.f32 0.0, %v1304
        %v1306 = vpop.f32.mrf.mxu0
        %v1307 = vpop.f32.mrf.mxu0
        %v1308 = vpop.f32.mrf.mxu0
        %1309 = vdwg.mxu0
        %1311 = vrot.lane.b32.xlu0 %v1305, 24
        %v1312 = vpop.permute.xlu0 %1311
        %vm1314 = vcmask 261312
        %1315 = vst.msk [vmem:[#allocation3] sm:$0xff] %vm1314, %v1312
        %v1316 = vld [vmem:[#allocation3] sm:$0xff]
        %v1317 = vld [vmem:[%s722] sm:$0xf]
        %v1318 = vld [vmem:[%s722 + $0x4] sm:$0xf]
        %v1319 = vld [vmem:[%s722 + $0x8] sm:$0xf]
        %v1320 = vld [vmem:[%s722 + $0xc] sm:$0xf]
        %v1321 = vld [vmem:[%s725] sm:$0x1]
        %v1322 = vpack.c.bf16 %v1316, %v1316
        %v1324 = vlaneseq
        %v1325 = vshrl.u32 %v1324, 7
        %v1326 = vsub.s32 0, %v1325
        %v1327 = vrot.slane %v1321, %v1326
        %v1333 = vunpack.c.l.b16 %v1317
        %v1334 = vunpack.c.l.b16 %v1318
        %v1335 = vunpack.c.l.b16 %v1319
        %v1336 = vunpack.c.l.b16 %v1320
        %v1337 = vpack.c.b16 %v1334, %v1333
        %v1338 = vpack.c.b16 %v1336, %v1335
        %v1342 = vsel %vm759, %v1322, 0
        %1344 = vmatprep.subr.bf16.mxu0 0
        %1345 = vmatpush1.bf16.msra.mxu0 0
        %1346 = vmatprep.subr.bf16.mxu0 0
        %1347 = vmatpush1.bf16.msra.mxu0 0
        %1348 = vmatprep.subr.bf16.mxu0 0
        %1349 = vmatpush1.bf16.msra.mxu0 0
        %1350 = vmatprep.subr.bf16.mxu0 0
        %1351 = vmatpush1.bf16.msra.mxu0 0
        %1352 = vmatprep.subr.bf16.mxu0 0
        %1353 = vmatpush1.bf16.msra.mxu0 0
        %1354 = vmatprep.subr.bf16.mxu0 0
        %1355 = vmatpush1.bf16.msra.mxu0 0
        %1356 = vmatprep.subr.bf16.mxu0 0
        %1357 = vmatpush1.bf16.msra.mxu0 %v1338
        %1358 = vmatprep.subr.bf16.mxu0 0
        %1359 = vmatpush1.bf16.msra.mxu0 %v1337
        %1360 = vmatprep.subr.bf16.mxu0 0
        %1361 = vmatpush2.bf16.msra.mxu0 0
        %1362 = vmatprep.subr.bf16.mxu0 0
        %1363 = vmatpush2.bf16.msra.mxu0 0
        %1364 = vmatprep.subr.bf16.mxu0 0
        %1365 = vmatpush2.bf16.msra.mxu0 0
        %1366 = vmatprep.subr.bf16.mxu0 0
        %1367 = vmatpush2.bf16.msra.mxu0 0
        %1368 = vmatprep.subr.bf16.mxu0 0
        %1369 = vmatpush2.bf16.msra.mxu0 0
        %1370 = vmatprep.subr.bf16.mxu0 0
        %1371 = vmatpush2.bf16.msra.mxu0 0
        %1372 = vmatprep.subr.bf16.mxu0 0
        %1373 = vmatpush2.bf16.msra.mxu0 0
        %1374 = vmatprep.subr.bf16.mxu0 0
        %1375 = vmatpush2.bf16.msra.mxu0 0
        %1376 = vmatprep.mubr.bf16.mxu0 0
        %1377 = vmatmul.mubr.bf16.gmra.mxu0 %v1342
        %v1378 = vpop.f32.mrf.mxu0
        %v1379 = vadd.f32 %v1327, %v1378
        %v1380 = vpop.f32.mrf.mxu0
        %v1381 = vpop.f32.mrf.mxu0
        %v1382 = vpop.f32.mrf.mxu0
        %1383 = vdwg.mxu0
        %v1384 = vadd.f32 %v756, %v1379
        %v1385 = vld [vmem:[%s728] sm:$0x1]
        %v1386 = vld [vmem:[%s731] sm:$0x1]
        %v1387 = vsel %vm759, %v1384, 0.0
        %1388 = vadd.xlane.f32.xlu0 %v1387
        %v1389 = vpop.xlane.xlu0 %1388
        %v1390 = vmul.f32 %v1389, %v763
        %v1391 = vsub.f32 %v1384, %v1390
        %v1392 = vmul.f32 %v1391, %v1391
        %v1393 = vsel %vm759, %v1392, 0.0
        %1394 = vadd.xlane.f32.xlu0 %v1393
        %v1395 = vpop.xlane.xlu0 %1394
        %v1396 = vmul.f32 %v1395, %v763
        %v1397 = vadd.f32 %v1396, 1e-05
        %v1398 = vrsqrt.pop %v1397
        %v1399 = vmul.f32 %v1391, %v1398
        %v1401 = vlaneseq
        %v1402 = vshrl.u32 %v1401, 7
        %v1403 = vsub.s32 0, %v1402
        %v1404 = vrot.slane %v1385, %v1403
        %v1406 = vmul.f32 %v1399, %v1404
        %v1408 = vlaneseq
        %v1409 = vshrl.u32 %v1408, 7
        %v1410 = vsub.s32 0, %v1409
        %v1411 = vrot.slane %v1386, %v1410
        %v1413 = vadd.f32 %v1406, %v1411
        %v1414 = vld [vmem:[%s736] sm:$0xf]
        %v1415 = vld [vmem:[%s736 + $0x4] sm:$0xf]
        %v1416 = vld [vmem:[%s736 + $0x8] sm:$0xf]
        %v1417 = vld [vmem:[%s736 + $0xc] sm:$0xf]
        %v1418 = vld [vmem:[%s739] sm:$0x1]
        %v1419 = vpack.c.bf16 %v1413, %v1413
        %v1421 = vlaneseq
        %v1422 = vshrl.u32 %v1421, 7
        %v1423 = vsub.s32 0, %v1422
        %v1424 = vrot.slane %v1418, %v1423
        %v1430 = vunpack.c.l.b16 %v1414
        %v1431 = vunpack.c.l.b16 %v1415
        %v1432 = vunpack.c.l.b16 %v1416
        %v1433 = vunpack.c.l.b16 %v1417
        %v1434 = vpack.c.b16 %v1431, %v1430
        %v1435 = vpack.c.b16 %v1433, %v1432
        %v1439 = vsel %vm759, %v1419, 0
        %1441 = vmatprep.subr.bf16.mxu0 0
        %1442 = vmatpush1.bf16.msra.mxu0 0
        %1443 = vmatprep.subr.bf16.mxu0 0
        %1444 = vmatpush1.bf16.msra.mxu0 0
        %1445 = vmatprep.subr.bf16.mxu0 0
        %1446 = vmatpush1.bf16.msra.mxu0 0
        %1447 = vmatprep.subr.bf16.mxu0 0
        %1448 = vmatpush1.bf16.msra.mxu0 0
        %1449 = vmatprep.subr.bf16.mxu0 0
        %1450 = vmatpush1.bf16.msra.mxu0 0
        %1451 = vmatprep.subr.bf16.mxu0 0
        %1452 = vmatpush1.bf16.msra.mxu0 0
        %1453 = vmatprep.subr.bf16.mxu0 0
        %1454 = vmatpush1.bf16.msra.mxu0 %v1435
        %1455 = vmatprep.subr.bf16.mxu0 0
        %1456 = vmatpush1.bf16.msra.mxu0 %v1434
        %1457 = vmatprep.subr.bf16.mxu0 0
        %1458 = vmatpush2.bf16.msra.mxu0 0
        %1459 = vmatprep.subr.bf16.mxu0 0
        %1460 = vmatpush2.bf16.msra.mxu0 0
        %1461 = vmatprep.subr.bf16.mxu0 0
        %1462 = vmatpush2.bf16.msra.mxu0 0
        %1463 = vmatprep.subr.bf16.mxu0 0
        %1464 = vmatpush2.bf16.msra.mxu0 0
        %1465 = vmatprep.subr.bf16.mxu0 0
        %1466 = vmatpush2.bf16.msra.mxu0 0
        %1467 = vmatprep.subr.bf16.mxu0 0
        %1468 = vmatpush2.bf16.msra.mxu0 0
        %1469 = vmatprep.subr.bf16.mxu0 0
        %1470 = vmatpush2.bf16.msra.mxu0 0
        %1471 = vmatprep.subr.bf16.mxu0 0
        %1472 = vmatpush2.bf16.msra.mxu0 0
        %1473 = vmatprep.mubr.bf16.mxu0 0
        %1474 = vmatmul.mubr.bf16.gmra.mxu0 %v1439
        %v1475 = vpop.f32.mrf.mxu0
        %v1476 = vadd.f32 %v1424, %v1475
        %v1477 = vpop.f32.mrf.mxu0
        %v1478 = vpop.f32.mrf.mxu0
        %v1479 = vpop.f32.mrf.mxu0
        %1480 = vdwg.mxu0
        %v1481 = vmul.f32 %v1476, 0.5
        %v1482 = vmul.f32 %v1476, 0.70710677
        %vm1483 = vcmp.ge.f32.partialorder %v1482, 0.0
        %v1484 = vsel %vm1483, 1.0, -1.0
        %v1485 = vand.u32 2147483647, %v1482
        %v1486 = vmul.f32 %v1485, 0.3275911
        %v1487 = vadd.f32 %v1486, 1.0
        %v1488 = vrcp.pop %v1487
        %v1489 = vmul.f32 %v1488, 1.0614054
        %v1490 = vadd.f32 %v1489, -1.4531521
        %v1491 = vmul.f32 %v1490, %v1488
        %v1492 = vadd.f32 %v1491, 1.4214138
        %v1493 = vmul.f32 %v1492, %v1488
        %v1494 = vadd.f32 %v1493, -0.28449672
        %v1495 = vmul.f32 %v1494, %v1488
        %v1496 = vadd.f32 %v1495, 0.2548296
        %v1497 = vmul.f32 %v1496, %v1488
        %v1498 = vsub.f32 0.0, %v1485
        %v1499 = vmul.f32 %v1498, %v1485
        %v1500 = vmul.f32 %v1499, 1.442695
        %v1501 = vpow.pop %v1500
        %v1502 = vmul.f32 %v1497, %v1501
        %v1503 = vsub.f32 1.0, %v1502
        %v1504 = vmul.f32 %v1484, %v1503
        %v1505 = vadd.f32 %v1504, 1.0
        %v1506 = vmul.f32 %v1481, %v1505
        %v1507 = vld [vmem:[%s744] sm:$0xf]
        %v1508 = vld [vmem:[%s744 + $0x4] sm:$0xf]
        %v1509 = vld [vmem:[%s744 + $0x8] sm:$0xf]
        %v1510 = vld [vmem:[%s744 + $0xc] sm:$0xf]
        %v1511 = vld [vmem:[%s744 + $0x10] sm:$0xf]
        %v1512 = vld [vmem:[%s744 + $0x14] sm:$0xf]
        %v1513 = vld [vmem:[%s744 + $0x18] sm:$0xf]
        %v1514 = vld [vmem:[%s744 + $0x1c] sm:$0xf]
        %v1515 = vld [vmem:[%s744 + $0x20] sm:$0xf]
        %v1516 = vld [vmem:[%s744 + $0x24] sm:$0xf]
        %v1517 = vld [vmem:[%s744 + $0x28] sm:$0xf]
        %v1518 = vld [vmem:[%s744 + $0x2c] sm:$0xf]
        %v1519 = vld [vmem:[%s744 + $0x30] sm:$0xf]
        %v1520 = vld [vmem:[%s744 + $0x34] sm:$0xf]
        %v1521 = vld [vmem:[%s744 + $0x38] sm:$0xf]
        %v1522 = vld [vmem:[%s744 + $0x3c] sm:$0xf]
        %v1523 = vld [vmem:[%s747] sm:$0x1]
        %v1524 = vpack.c.bf16 %v1506, %v1506
        %v1526 = vlaneseq
        %v1527 = vshrl.u32 %v1526, 7
        %v1528 = vsub.s32 0, %v1527
        %v1529 = vrot.slane %v1523, %v1528
        %v1547 = vunpack.c.l.b16 %v1507
        %v1548 = vunpack.c.l.b16 %v1508
        %v1549 = vunpack.c.l.b16 %v1509
        %v1550 = vunpack.c.l.b16 %v1510
        %v1551 = vunpack.c.l.b16 %v1511
        %v1552 = vunpack.c.l.b16 %v1512
        %v1553 = vunpack.c.l.b16 %v1513
        %v1554 = vunpack.c.l.b16 %v1514
        %v1555 = vunpack.c.l.b16 %v1515
        %v1556 = vunpack.c.l.b16 %v1516
        %v1557 = vunpack.c.l.b16 %v1517
        %v1558 = vunpack.c.l.b16 %v1518
        %v1559 = vunpack.c.l.b16 %v1519
        %v1560 = vunpack.c.l.b16 %v1520
        %v1561 = vunpack.c.l.b16 %v1521
        %v1562 = vunpack.c.l.b16 %v1522
        %v1563 = vpack.c.b16 %v1548, %v1547
        %v1564 = vpack.c.b16 %v1550, %v1549
        %v1565 = vpack.c.b16 %v1552, %v1551
        %v1566 = vpack.c.b16 %v1554, %v1553
        %v1567 = vpack.c.b16 %v1556, %v1555
        %v1568 = vpack.c.b16 %v1558, %v1557
        %v1569 = vpack.c.b16 %v1560, %v1559
        %v1570 = vpack.c.b16 %v1562, %v1561
        %1579 = vmatprep.subr.bf16.mxu0 0
        %1580 = vmatpush1.bf16.msra.mxu0 %v1570
        %1581 = vmatprep.subr.bf16.mxu0 0
        %1582 = vmatpush1.bf16.msra.mxu0 %v1569
        %1583 = vmatprep.subr.bf16.mxu0 0
        %1584 = vmatpush1.bf16.msra.mxu0 %v1568
        %1585 = vmatprep.subr.bf16.mxu0 0
        %1586 = vmatpush1.bf16.msra.mxu0 %v1567
        %1587 = vmatprep.subr.bf16.mxu0 0
        %1588 = vmatpush1.bf16.msra.mxu0 %v1566
        %1589 = vmatprep.subr.bf16.mxu0 0
        %1590 = vmatpush1.bf16.msra.mxu0 %v1565
        %1591 = vmatprep.subr.bf16.mxu0 0
        %1592 = vmatpush1.bf16.msra.mxu0 %v1564
        %1593 = vmatprep.subr.bf16.mxu0 0
        %1594 = vmatpush1.bf16.msra.mxu0 %v1563
        %1595 = vmatprep.subr.bf16.mxu0 0
        %1596 = vmatpush2.bf16.msra.mxu0 0
        %1597 = vmatprep.subr.bf16.mxu0 0
        %1598 = vmatpush2.bf16.msra.mxu0 0
        %1599 = vmatprep.subr.bf16.mxu0 0
        %1600 = vmatpush2.bf16.msra.mxu0 0
        %1601 = vmatprep.subr.bf16.mxu0 0
        %1602 = vmatpush2.bf16.msra.mxu0 0
        %1603 = vmatprep.subr.bf16.mxu0 0
        %1604 = vmatpush2.bf16.msra.mxu0 0
        %1605 = vmatprep.subr.bf16.mxu0 0
        %1606 = vmatpush2.bf16.msra.mxu0 0
        %1607 = vmatprep.subr.bf16.mxu0 0
        %1608 = vmatpush2.bf16.msra.mxu0 0
        %1609 = vmatprep.subr.bf16.mxu0 0
        %1610 = vmatpush2.bf16.msra.mxu0 0
        %1611 = vmatprep.mubr.bf16.mxu0 0
        %1612 = vmatmul.mubr.bf16.gmra.mxu0 %v1524
        %v1613 = vpop.f32.mrf.mxu0
        %v1614 = vadd.f32 %v1529, %v1613
        %v1615 = vpop.f32.mrf.mxu0
        %v1616 = vpop.f32.mrf.mxu0
        %v1617 = vpop.f32.mrf.mxu0
        %1618 = vdwg.mxu0
        %v1619 = vadd.f32 %v1384, %v1614
        %1620 = vst.msk [vmem:[#allocation2] sm:$0xff] %vm759, %v1619
        %p1621 = scmp.eq.s32.totalorder %s36, 1
        // Predicated region
        $region93: #{tpu_custom_call.1} parent=87 // pred_check
          %p1622 = pneg %p1621
        $region94: #{tpu_custom_call.1} parent=87 // pred_check_branch
          %1624 = sbr.rel (%p1622) target = $region96
        $region95: #{tpu_custom_call.1} parent=87 // pred_region
          %v1625 = vld [vmem:[%s13] sm:$0x1]
          %v1626 = vld [vmem:[%s14] sm:$0x1]
          %v1627 = vsel %vm759, %v1619, 0.0
          %1628 = vadd.xlane.f32.xlu0 %v1627
          %v1629 = vpop.xlane.xlu0 %1628
          %v1630 = vmul.f32 %v1629, %v763
          %v1631 = vsub.f32 %v1619, %v1630
          %v1632 = vmul.f32 %v1631, %v1631
          %v1633 = vsel %vm759, %v1632, 0.0
          %1634 = vadd.xlane.f32.xlu0 %v1633
          %v1635 = vpop.xlane.xlu0 %1634
          %v1636 = vmul.f32 %v1635, %v763
          %v1637 = vadd.f32 %v1636, 1e-05
          %v1638 = vrsqrt.pop %v1637
          %v1639 = vmul.f32 %v1631, %v1638
          %v1641 = vlaneseq
          %v1642 = vshrl.u32 %v1641, 7
          %v1643 = vsub.s32 0, %v1642
          %v1644 = vrot.slane %v1625, %v1643
          %v1646 = vmul.f32 %v1639, %v1644
          %v1648 = vlaneseq
          %v1649 = vshrl.u32 %v1648, 7
          %v1650 = vsub.s32 0, %v1649
          %v1651 = vrot.slane %v1626, %v1650
          %v1653 = vadd.f32 %v1646, %v1651
          %v1654 = vld [vmem:[%s15] sm:$0xf]
          %v1655 = vld [vmem:[%s15 + $0x4] sm:$0xf]
          %v1656 = vld [vmem:[%s15 + $0x8] sm:$0xf]
          %v1657 = vld [vmem:[%s15 + $0xc] sm:$0xf]
          %v1658 = vld [vmem:[%s16] sm:$0x1]
          %v1659 = vpack.c.bf16 %v1653, %v1653
          %v1661 = vlaneseq
          %v1662 = vshrl.u32 %v1661, 7
          %v1663 = vsub.s32 0, %v1662
          %v1664 = vrot.slane %v1658, %v1663
          %v1670 = vunpack.c.l.b16 %v1654
          %v1671 = vunpack.c.l.b16 %v1655
          %v1672 = vunpack.c.l.b16 %v1656
          %v1673 = vunpack.c.l.b16 %v1657
          %v1674 = vpack.c.b16 %v1671, %v1670
          %v1675 = vpack.c.b16 %v1673, %v1672
          %v1679 = vsel %vm759, %v1659, 0
          %1681 = vmatprep.subr.bf16.mxu0 0
          %1682 = vmatpush1.bf16.msra.mxu0 0
          %1683 = vmatprep.subr.bf16.mxu0 0
          %1684 = vmatpush1.bf16.msra.mxu0 0
          %1685 = vmatprep.subr.bf16.mxu0 0
          %1686 = vmatpush1.bf16.msra.mxu0 0
          %1687 = vmatprep.subr.bf16.mxu0 0
          %1688 = vmatpush1.bf16.msra.mxu0 0
          %1689 = vmatprep.subr.bf16.mxu0 0
          %1690 = vmatpush1.bf16.msra.mxu0 0
          %1691 = vmatprep.subr.bf16.mxu0 0
          %1692 = vmatpush1.bf16.msra.mxu0 0
          %1693 = vmatprep.subr.bf16.mxu0 0
          %1694 = vmatpush1.bf16.msra.mxu0 %v1675
          %1695 = vmatprep.subr.bf16.mxu0 0
          %1696 = vmatpush1.bf16.msra.mxu0 %v1674
          %1697 = vmatprep.subr.bf16.mxu0 0
          %1698 = vmatpush2.bf16.msra.mxu0 0
          %1699 = vmatprep.subr.bf16.mxu0 0
          %1700 = vmatpush2.bf16.msra.mxu0 0
          %1701 = vmatprep.subr.bf16.mxu0 0
          %1702 = vmatpush2.bf16.msra.mxu0 0
          %1703 = vmatprep.subr.bf16.mxu0 0
          %1704 = vmatpush2.bf16.msra.mxu0 0
          %1705 = vmatprep.subr.bf16.mxu0 0
          %1706 = vmatpush2.bf16.msra.mxu0 0
          %1707 = vmatprep.subr.bf16.mxu0 0
          %1708 = vmatpush2.bf16.msra.mxu0 0
          %1709 = vmatprep.subr.bf16.mxu0 0
          %1710 = vmatpush2.bf16.msra.mxu0 0
          %1711 = vmatprep.subr.bf16.mxu0 0
          %1712 = vmatpush2.bf16.msra.mxu0 0
          %1713 = vmatprep.mubr.bf16.mxu0 0
          %1714 = vmatmul.mubr.bf16.gmra.mxu0 %v1679
          %v1715 = vpop.f32.mrf.mxu0
          %v1716 = vadd.f32 %v1664, %v1715
          %v1717 = vpop.f32.mrf.mxu0
          %v1718 = vpop.f32.mrf.mxu0
          %v1719 = vpop.f32.mrf.mxu0
          %1720 = vdwg.mxu0
          %1721 = vst [vmem:[%s699] sm:$0xff] %v1716
        $region96: #{tpu_custom_call.1} parent=87 // pred_fallthru
          _
        %s1722 = sand.u32 %s473, 1
        %s1723 = scalar_lea.sflag [#allocation5], %s1722
        %s1724 = sand.u32 %s473, 1
        %s1725 = smul.addr %s1724, 8
        %s1726 = scalar_lea.vmem [#allocation4], %s1725
        // Predicated region
        $region97: #{tpu_custom_call.1} parent=87 // pred_check
          %p1727 = pneg %p483
        $region98: #{tpu_custom_call.1} parent=87 // pred_check_branch
          %1729 = sbr.rel (%p1727) target = $region100
        $region99: #{tpu_custom_call.1} parent=87 // pred_region
          %s1731 = ssub.s32 128, 128
          %1732 = vsyncadd %s1723, %s1731
          %s1733 = smul.addr %s35, 128
          %s1734 = scalar_lea.hbm %s17, %s1733
          %s1736 = sshll.u32 %s1726, 4
          %s1737 = int_to_ptr.vmem [resolvable:$true] %s1736
          %1739 = dma.vmem_to_hbm [thread:$0]  %s1737, 128, %s1734, %s1723
        $region100: #{tpu_custom_call.1} parent=87 // pred_fallthru
          _
      $region88: #{tpu_custom_call.1} parent=5 // pred_fallthru
        _
      %p1740 = scmp.le.s32.totalorder 2, %s26
      // Predicated region
      $region101: #{tpu_custom_call.1} parent=5 // pred_check
        %p1741 = pneg %p1740
      $region102: #{tpu_custom_call.1} parent=5 // pred_check_branch
        %1743 = sbr.rel (%p1741) target = $region104
      $region103: #{tpu_custom_call.1} parent=5 // pred_region
        %s1744 = ssub.s32 %s26, 2
        // Predicated region
        $region105: #{tpu_custom_call.1} parent=103 // pred_check
          %p1745 = pneg %p489
        $region106: #{tpu_custom_call.1} parent=103 // pred_check_branch
          %1747 = sbr.rel (%p1745) target = $region108
        $region107: #{tpu_custom_call.1} parent=103 // pred_region
          %s1748 = sand.u32 %s474, 1
          %s1749 = scalar_lea.sflag [#allocation5], %s1748
          %s1750 = sand.u32 %s474, 1
          %s1751 = smul.addr %s1750, 8
          %s1752 = scalar_lea.vmem [#allocation4], %s1751
          %1753 = dma.done %s1749, 128
        $region108: #{tpu_custom_call.1} parent=103 // pred_fallthru
          _
      $region104: #{tpu_custom_call.1} parent=5 // pred_fallthru
        _
    $region6: #{tpu_custom_call.1} parent=1 // loop_footer
      %s30 = sadd.s32 1, %s26
    $region7: #{tpu_custom_call.1} parent=1 // loop_footer_branch
      %25 = sbr.rel target = $region3
    $region8: #{tpu_custom_call.1} parent=1 // loop_exit
      _
    %1754 = vsyncpa [#allocation5], 1
    %s1755 = scalar_lea.sflag [#allocation5], 1
    %1756 = vsyncpa %s1755, 1

</llo_original>
